<compile_context>
chip_gen: v7x
topology: tpu7x:2x2x1
jax: 0.10.0
libtpu: 0.0.40
codegen_flags: <defaults>
</compile_context>

<pallas_src>
import math

import jax
import jax.numpy as jnp
from jax.experimental import pallas as pl
from jax.experimental.pallas import tpu as pltpu


_TWO_PI = 2.0 * math.pi
# Cody-Waite split of 2*pi: HI needs only ~8 mantissa bits, so k * HI is exact
# in f32 for the integer multiples k that diffusion timesteps produce
# (exact while k = round(arg / 2pi) stays below ~2^16).
_TWO_PI_HI = 6.28125
_TWO_PI_LO = _TWO_PI - _TWO_PI_HI          # 0.001935307179586...
_INV_TWO_PI = 1.0 / _TWO_PI


def _round_up(x: int, m: int) -> int:
    return ((x + m - 1) // m) * m


def _reference(time: jax.Array, dim: int) -> jax.Array:
    """Pure-JAX faithful port of the PyTorch forward (also the tiny-shape path)."""
    half = dim // 2
    scale = math.log(10000.0) / (half - 1)
    freqs = jnp.exp(jnp.arange(half, dtype=jnp.float32) * -scale)
    arg = time.astype(jnp.float32)[:, None] * freqs[None, :]
    return jnp.concatenate([jnp.sin(arg), jnp.cos(arg)], axis=-1)


def _make_kernel(half: int):
    lane_aligned = (half % 128 == 0)

    def kernel(t_ref, f_ref, o_ref):
        """t_ref: (TB, 1) f32; f_ref: (1, half) f32; o_ref: (TB, 2*half)."""
        # (TB, 1) * (1, half) -> (TB, half); broadcast rides otherwise-idle slots.
        arg = t_ref[...] * f_ref[...]
        # Range-reduce to ~[-pi, pi] so sin/cos precision is timestep-independent.
        k = jnp.floor(arg * _INV_TWO_PI + 0.5)
        r = (arg - k * _TWO_PI_HI) - k * _TWO_PI_LO
        s = jnp.sin(r)
        c = jnp.cos(r)
        if lane_aligned:
            # Both halves are 128-lane aligned: two unmasked half-width stores.
            o_ref[:, :half] = s.astype(o_ref.dtype)
            o_ref[:, half:] = c.astype(o_ref.dtype)
        else:
            # half % 128 != 0: sub-128-lane slice stores would compile to masked
            # vst.msk + lane shuffles. Build the full row in vregs (the concat's
            # cross-lane move uses the idle XLU slot) and do one lane-dense store.
            o_ref[...] = jnp.concatenate([s, c], axis=-1).astype(o_ref.dtype)

    return kernel


def _pick_block_rows(batch: int, dim: int, itemsize: int) -> int:
    # Sublane packing for the output dtype: f32 -> 8, bf16 -> 16, 8-bit -> 32.
    sub = 8 if itemsize >= 4 else (16 if itemsize == 2 else 32)
    # Target >= ~4 MiB of output writeback per grid step.
    target = (4 << 20) // (dim * itemsize)
    # Double-buffered working set under ~12 MiB (fits every generation's
    # default scoped VMEM: v5e 16 MiB, v6e/v7x 32 MiB):
    #   out  : 2 * tb * dim * itemsize
    #   time : 2 * tb * 512   ((tb, 1) f32 block pads to a (tb, 128) lane tile)
    budget = (12 << 20) // (2 * (dim * itemsize + 512))
    tb = min(target, budget, _round_up(batch, sub))
    tb = (tb // sub) * sub
    return max(sub, tb)


def sinusoidal_positional_embedding(
    time: jax.Array,
    dim: int,
    *,
    out_dtype=jnp.float32,
    block_rows: int | None = None,
    use_pallas: bool | None = None,
    core_parallel: bool = False,     # set True on v7x (2 TCs/chip) to shard the row axis
) -> jax.Array:
    """time: (B,) timesteps -> (B, dim) embedding [sin | cos]."""
    assert dim % 2 == 0 and dim // 2 >= 2, "dim must be even and >= 4"
    B = time.shape[0]
    half = dim // 2
    itemsize = jnp.dtype(out_dtype).itemsize

    if use_pallas is None:
        # Below ~1 MiB of output, pallas_call launch + per-step overhead loses
        # to the fused XLA path (which can also fuse into neighboring ops).
        use_pallas = B * dim * itemsize >= (1 << 20)
    if not use_pallas:
        return _reference(time, dim).astype(out_dtype)

    # Grid-invariant frequency table, computed once outside the kernel.
    scale = math.log(10000.0) / (half - 1)
    freqs = jnp.exp(jnp.arange(half, dtype=jnp.float32) * -scale).reshape(1, half)
    t2d = time.astype(jnp.float32).reshape(B, 1)

    tb = block_rows if block_rows is not None else _pick_block_rows(B, dim, itemsize)
    grid = (pl.cdiv(B, tb),)   # ragged last block: Pallas masks its writeback

    # Plain "parallel" does not shard across v7x's 2 TensorCores; CORE_PARALLEL does.
    sem = (pltpu.CORE_PARALLEL,) if core_parallel else ("parallel",)

    return pl.pallas_call(
        _make_kernel(half),
        out_shape=jax.ShapeDtypeStruct((B, dim), out_dtype),
        grid=grid,
        in_specs=[
            pl.BlockSpec((tb, 1), lambda i: (i, 0)),      # timestep column tile
            pl.BlockSpec((1, half), lambda i: (0, 0)),    # resident freq table
        ],
        out_specs=pl.BlockSpec((tb, dim), lambda i: (i, 0)),
        compiler_params=pltpu.CompilerParams(dimension_semantics=sem),
        cost_estimate=pl.CostEstimate(
            flops=6 * B * dim,                # range reduction + outer product
            transcendentals=B * dim,          # sin + cos over (B, half) each
            bytes_accessed=B * dim * itemsize + B * 4 + half * 4,
        ),
    )(t2d, freqs)


if __name__ == "__main__":
    key = jax.random.PRNGKey(0)

    # 1) half=64 (not 128-aligned) -> lane-dense concat store path.
    B, dim = 64, 128
    time = jax.random.randint(key, (B,), 0, 1000).astype(jnp.float32)
    out = jax.block_until_ready(
        sinusoidal_positional_embedding(time, dim, use_pallas=True))
    ref = _reference(time, dim)
    assert out.shape == (B, dim), out.shape
    # Mosaic and XLA use different sin/cos/exp implementations; outputs are
    # O(1), so 1e-3 absolute catches any real frequency/ordering/layout bug.
    err = float(jnp.max(jnp.abs(out - ref)))
    assert err < 1e-3, f"max abs err {err} vs reference"

    # 2) Ragged grid (B % tb != 0): no pad / out[:B] round trip, Pallas masks
    #    the last block's writeback.
    B2, dim2 = 100, 192
    t2 = jax.random.randint(jax.random.PRNGKey(1), (B2,), 0, 1000).astype(jnp.float32)
    out2 = jax.block_until_ready(
        sinusoidal_positional_embedding(t2, dim2, use_pallas=True, block_rows=32))
    assert out2.shape == (B2, dim2), out2.shape
    err2 = float(jnp.max(jnp.abs(out2 - _reference(t2, dim2))))
    assert err2 < 1e-3, f"max abs err {err2} vs reference (ragged)"

    # 3) half=128 (lane-aligned) -> two unmasked half stores, bf16 output
    #    (f32 math, only the final store is bf16).
    B3, dim3 = 64, 256
    t3 = jax.random.randint(jax.random.PRNGKey(2), (B3,), 0, 1000).astype(jnp.float32)
    out3 = jax.block_until_ready(
        sinusoidal_positional_embedding(t3, dim3, use_pallas=True,
                                        out_dtype=jnp.bfloat16))
    assert out3.shape == (B3, dim3), out3.shape
    err3 = float(jnp.max(jnp.abs(out3.astype(jnp.float32) - _reference(t3, dim3))))
    assert err3 < 1e-2, f"max abs err {err3} vs reference (bf16)"

    # 4) Tiny-shape fallback path (fused XLA) keeps the module semantics too.
    t4 = jax.random.randint(jax.random.PRNGKey(3), (8,), 0, 1000).astype(jnp.float32)
    out4 = jax.block_until_ready(sinusoidal_positional_embedding(t4, 32))
    assert jnp.allclose(out4, _reference(t4, 32), atol=1e-6)

    print("KERNEL_OK")
</pallas_src>

<mosaic_0001>
module attributes {stable_mosaic.version = 11 : i64} {
  func.func @kernel(%arg0: i32, %arg1: memref<64x1xf32, #tpu.memory_space<vmem>>, %arg2: memref<1x64xf32, #tpu.memory_space<vmem>>, %arg3: memref<64x128xf32, #tpu.memory_space<vmem>>) attributes {dimension_semantics = [#tpu.dimension_semantics<parallel>], iteration_bounds = array<i64: 1>, scalar_prefetch = 0 : i64, scratch_operands = 0 : i64, tpu.core_type = #tpu.core_type<tc>, window_params = [{transform_indices = @transform_0, window_bounds = array<i64: 64, 1>}, {pipeline_mode = #tpu.pipeline_mode<synchronous>, transform_indices = @transform_1, window_bounds = array<i64: 1, 64>}, {transform_indices = @transform_2, window_bounds = array<i64: 64, 128>}]} {
    %c0 = arith.constant 0 : index
    %c0_0 = arith.constant 0 : index
    %0 = vector.load %arg1[%c0, %c0_0] : memref<64x1xf32, #tpu.memory_space<vmem>>, vector<64x1xf32>
    %c0_1 = arith.constant 0 : index
    %c0_2 = arith.constant 0 : index
    %1 = vector.load %arg2[%c0_1, %c0_2] : memref<1x64xf32, #tpu.memory_space<vmem>>, vector<1x64xf32>
    %2 = vector.broadcast %0 : vector<64x1xf32> to vector<64x64xf32>
    %3 = vector.broadcast %1 : vector<1x64xf32> to vector<64x64xf32>
    %4 = arith.mulf %2, %3 : vector<64x64xf32>
    %cst = arith.constant 0.159154937 : f32
    %5 = vector.broadcast %cst : f32 to vector<64x64xf32>
    %6 = arith.mulf %4, %5 : vector<64x64xf32>
    %cst_3 = arith.constant 5.000000e-01 : f32
    %7 = vector.broadcast %cst_3 : f32 to vector<64x64xf32>
    %8 = arith.addf %6, %7 : vector<64x64xf32>
    %9 = math.floor %8 : vector<64x64xf32>
    %cst_4 = arith.constant 6.281250e+00 : f32
    %10 = vector.broadcast %cst_4 : f32 to vector<64x64xf32>
    %11 = arith.mulf %9, %10 : vector<64x64xf32>
    %12 = arith.subf %4, %11 : vector<64x64xf32>
    %cst_5 = arith.constant 0.00193530717 : f32
    %13 = vector.broadcast %cst_5 : f32 to vector<64x64xf32>
    %14 = arith.mulf %9, %13 : vector<64x64xf32>
    %15 = arith.subf %12, %14 : vector<64x64xf32>
    %16 = math.sin %15 : vector<64x64xf32>
    %17 = math.cos %15 : vector<64x64xf32>
    %18 = tpu.concatenate %16, %17 in 1 : vector<64x64xf32>, vector<64x64xf32> -> vector<64x128xf32>
    %c0_6 = arith.constant 0 : index
    %c0_7 = arith.constant 0 : index
    %19 = vector.load %arg3[%c0_6, %c0_7] : memref<64x128xf32, #tpu.memory_space<vmem>>, vector<64x128xf32>
    tpu.vector_store %arg3[%c0_6, %c0_7], %18 {strides = array<i32>} : memref<64x128xf32, #tpu.memory_space<vmem>>, vector<64x128xf32>,
    return
  }
  func.func @transform_0(%arg0: i32) -> (i32, i32) {
    %c0_i32 = arith.constant 0 : i32
    %c0_i32_0 = arith.constant 0 : i32
    return %arg0, %c0_i32 : i32, i32
  }
  func.func @transform_1(%arg0: i32) -> (i32, i32) {
    %c0_i32 = arith.constant 0 : i32
    %c0_i32_0 = arith.constant 0 : i32
    %c0_i32_1 = arith.constant 0 : i32
    return %c0_i32, %c0_i32_0 : i32, i32
  }
  func.func @transform_2(%arg0: i32) -> (i32, i32) {
    %c0_i32 = arith.constant 0 : i32
    %c0_i32_0 = arith.constant 0 : i32
    return %arg0, %c0_i32 : i32, i32
  }
}

</mosaic_0001>

<llo_original>
// kernel: tpu_custom_call.1
$region0: #{tpu_custom_call.1}
  #allocation0 [shape = 'u32[]', space=smem, size = 0x4, offset = 0x4, fixed_abs, tag = 'smem constant byte address 0x4 - core index']
  #allocation1 [shape = 'u32[144,128]{1,0:T(1,128)}', space=vmem, size = 0x12000, scoped, tag = 'internal scratch']
  %s0 = inlined_call_operand.vmem [shape: f32[64,1], index: 0, kind: input, shape index: {}]
  %s1 = inlined_call_operand.vmem [shape: f32[1,64], index: 1, kind: input, shape index: {}]
  %s2 = inlined_call_operand.hbm [shape: f32[64,128], index: 2, kind: output, shape index: {}]
  %s3 = sld [smem:[#allocation0]]
  $region18: #{tpu_custom_call.1} parent=0
    _
  %s5 = ssub.s32 1, %s3
  %s6 = scalar_select 0, %s5, %s3
  $region1: #{tpu_custom_call.1} parent=0
    #allocation2 [shape = 'u8[32768]{0}', space=vmem, size = 0x8000, scoped, tag = 'output window, operand 0, single buffered']
    #allocation3 [shape = 's32[1]{0}', space=sflag, size = 0x4, scoped, tag = 'scoped memory for tpu_custom_call.1']
    %7 = vsyncpa [#allocation3], 0
    // Predicated region
    $region2: #{tpu_custom_call.1} parent=1 // pred_check
      _
    $region3: #{tpu_custom_call.1} parent=1 // pred_check_branch
      %9 = sbr.rel (0) target = $region5
    $region4: #{tpu_custom_call.1} parent=1 // pred_region
      _
    $region5: #{tpu_custom_call.1} parent=1 // pred_fallthru
      _
    // Predicated region
    $region6: #{tpu_custom_call.1} parent=1 // pred_check
      _
    $region7: #{tpu_custom_call.1} parent=1 // pred_check_branch
      %11 = sbr.rel (0) target = $region9
    $region8: #{tpu_custom_call.1} parent=1 // pred_region
      _
    $region9: #{tpu_custom_call.1} parent=1 // pred_fallthru
      _
    %v12 = vld [vmem:[%s0] sm:$0xff]
    %v13 = vld [vmem:[%s0 + $0x8] sm:$0xff]
    %v14 = vld [vmem:[%s0 + $0x10] sm:$0xff]
    %v15 = vld [vmem:[%s0 + $0x18] sm:$0xff]
    %v16 = vld [vmem:[%s0 + $0x20] sm:$0xff]
    %v17 = vld [vmem:[%s0 + $0x28] sm:$0xff]
    %v18 = vld [vmem:[%s0 + $0x30] sm:$0xff]
    %v19 = vld [vmem:[%s0 + $0x38] sm:$0xff]
    %v20 = vld [vmem:[%s1] sm:$0x1]
    %22 = vset.pattern.permute.xlu0 0
    %23 = vperm.xlu0 %22, %v12
    %v24 = vpop.permute.xlu0 %23
    %27 = vset.pattern.permute.xlu0 0
    %28 = vperm.xlu0 %27, %v13
    %v29 = vpop.permute.xlu0 %28
    %32 = vset.pattern.permute.xlu0 0
    %33 = vperm.xlu0 %32, %v14
    %v34 = vpop.permute.xlu0 %33
    %37 = vset.pattern.permute.xlu0 0
    %38 = vperm.xlu0 %37, %v15
    %v39 = vpop.permute.xlu0 %38
    %42 = vset.pattern.permute.xlu0 0
    %43 = vperm.xlu0 %42, %v16
    %v44 = vpop.permute.xlu0 %43
    %47 = vset.pattern.permute.xlu0 0
    %48 = vperm.xlu0 %47, %v17
    %v49 = vpop.permute.xlu0 %48
    %52 = vset.pattern.permute.xlu0 0
    %53 = vperm.xlu0 %52, %v18
    %v54 = vpop.permute.xlu0 %53
    %57 = vset.pattern.permute.xlu0 0
    %58 = vperm.xlu0 %57, %v19
    %v59 = vpop.permute.xlu0 %58
    %v62 = vlaneseq
    %v63 = vshrl.u32 %v62, 7
    %v64 = vsub.s32 0, %v63
    %v65 = vrot.slane %v20, %v64
    %v67 = vmul.f32 %v24, %v65
    %v68 = vmul.f32 %v29, %v65
    %v69 = vmul.f32 %v34, %v65
    %v70 = vmul.f32 %v39, %v65
    %v71 = vmul.f32 %v44, %v65
    %v72 = vmul.f32 %v49, %v65
    %v73 = vmul.f32 %v54, %v65
    %v74 = vmul.f32 %v59, %v65
    %v75 = vmul.f32 %v67, 0.15915494
    %v76 = vmul.f32 %v68, 0.15915494
    %v77 = vmul.f32 %v69, 0.15915494
    %v78 = vmul.f32 %v70, 0.15915494
    %v79 = vmul.f32 %v71, 0.15915494
    %v80 = vmul.f32 %v72, 0.15915494
    %v81 = vmul.f32 %v73, 0.15915494
    %v82 = vmul.f32 %v74, 0.15915494
    %v83 = vadd.f32 %v75, 0.5
    %v84 = vadd.f32 %v76, 0.5
    %v85 = vadd.f32 %v77, 0.5
    %v86 = vadd.f32 %v78, 0.5
    %v87 = vadd.f32 %v79, 0.5
    %v88 = vadd.f32 %v80, 0.5
    %v89 = vadd.f32 %v81, 0.5
    %v90 = vadd.f32 %v82, 0.5
    %v91 = vfloor.f32 %v83
    %v92 = vfloor.f32 %v84
    %v93 = vfloor.f32 %v85
    %v94 = vfloor.f32 %v86
    %v95 = vfloor.f32 %v87
    %v96 = vfloor.f32 %v88
    %v97 = vfloor.f32 %v89
    %v98 = vfloor.f32 %v90
    %v99 = vmul.f32 %v91, 6.28125
    %v100 = vmul.f32 %v92, 6.28125
    %v101 = vmul.f32 %v93, 6.28125
    %v102 = vmul.f32 %v94, 6.28125
    %v103 = vmul.f32 %v95, 6.28125
    %v104 = vmul.f32 %v96, 6.28125
    %v105 = vmul.f32 %v97, 6.28125
    %v106 = vmul.f32 %v98, 6.28125
    %v107 = vsub.f32 %v67, %v99
    %v108 = vsub.f32 %v68, %v100
    %v109 = vsub.f32 %v69, %v101
    %v110 = vsub.f32 %v70, %v102
    %v111 = vsub.f32 %v71, %v103
    %v112 = vsub.f32 %v72, %v104
    %v113 = vsub.f32 %v73, %v105
    %v114 = vsub.f32 %v74, %v106
    %v115 = vmul.f32 %v91, 0.0019353072
    %v116 = vmul.f32 %v92, 0.0019353072
    %v117 = vmul.f32 %v93, 0.0019353072
    %v118 = vmul.f32 %v94, 0.0019353072
    %v119 = vmul.f32 %v95, 0.0019353072
    %v120 = vmul.f32 %v96, 0.0019353072
    %v121 = vmul.f32 %v97, 0.0019353072
    %v122 = vmul.f32 %v98, 0.0019353072
    %v123 = vsub.f32 %v107, %v115
    %v124 = vsub.f32 %v108, %v116
    %v125 = vsub.f32 %v109, %v117
    %v126 = vsub.f32 %v110, %v118
    %v127 = vsub.f32 %v111, %v119
    %v128 = vsub.f32 %v112, %v120
    %v129 = vsub.f32 %v113, %v121
    %v130 = vsub.f32 %v114, %v122
    %v131 = vand.u32 2147483647, %v123
    %vm132 = vcmp.le.f32.partialorder %v131, 0.7853982
    %vm133 = vcmp.lt.s32.totalorder %v123, 0
    %v134 = vand.u32 %v123, 2139095040
    %v135 = vshrl.u32 %v134, 23
    %v136 = vsub.s32 %v135, 127
    %v137 = vand.u32 2147483647, %v123
    %v138 = vand.u32 %v137, 8388607
    %v139 = vor.u32 %v138, 8388608
    %v140 = vsub.s32 0, %v139
    %v141 = vadd.s32 %v136, 1
    %vm142 = vcmp.gt.s32.totalorder %v141, 0
    %v143 = vsel %vm142, %v141, 0
    %v144 = vshrl.u32 %v143, 5
    %v145 = vand.u32 %v143, 31
    %v146 = vsub.s32 32, %v145
    %v147 = vshrl.u32 683565275, %v146
    %v148 = vshll.u32 683565275, %v145
    %v149 = vshrl.u32 2475754826, %v146
    %v150 = vor.u32 %v148, %v149
    %v151 = vshll.u32 2475754826, %v145
    %v152 = vshrl.u32 2131351028, %v146
    %v153 = vor.u32 %v151, %v152
    %v154 = vshll.u32 2131351028, %v145
    %v155 = vshrl.u32 2102212464, %v146
    %v156 = vor.u32 %v154, %v155
    %v157 = vshll.u32 2102212464, %v145
    %v158 = vshrl.u32 920167782, %v146
    %v159 = vor.u32 %v157, %v158
    %v160 = vshll.u32 920167782, %v145
    %v161 = vshrl.u32 1326507024, %v146
    %v162 = vor.u32 %v160, %v161
    %vm163 = vcmp.lt.s32.totalorder %v144, 1
    %vm164 = vcmp.lt.s32.totalorder %v144, 2
    %vm165 = vcmp.lt.s32.totalorder %v144, 3
    %vm166 = vcmp.lt.s32.totalorder %v144, 4
    %v167 = vsel %vm163, %v147, %v150
    %v168 = vsel %vm166, %v156, 2102212464
    %v169 = vsel %vm165, %v153, %v168
    %v170 = vsel %vm164, %v167, %v169
    %v171 = vsel %vm163, %v150, %v153
    %v172 = vsel %vm166, %v159, 920167782
    %v173 = vsel %vm165, %v156, %v172
    %v174 = vsel %vm164, %v171, %v173
    %v175 = vsel %vm163, %v153, %v156
    %v176 = vsel %vm166, %v162, 1326507024
    %v177 = vsel %vm165, %v159, %v176
    %v178 = vsel %vm164, %v175, %v177
    %v179 = vshll.u32 %v139, 8
    %v180 = vmul.u32.u64.compose %v179, %v178
    %v181 = vextract.low.u32 %v180
    %v182 = vextract.high.u32 %v180
    %v183 = vmul.u32.u64.compose %v179, %v174
    %v184 = vextract.low.u32 %v183
    %v185 = vextract.high.u32 %v183
    %v186 = vmul.u32 %v179, %v170
    %v187 = vadd.s32 %v182, %v184
    %vm188 = vc.u32 %v182, %v184
    %v189 = vadd.s32 %v185, 1
    %v190 = vsel %vm188, %v189, %v185
    %v191 = vadd.s32 %v186, %v190
    %v192 = vadd.s32 %v191, 536870912
    %v193 = vshrl.u32 %v192, 30
    %v194 = vshll.u32 %v193, 30
    %v195 = vsub.s32 %v191, %v194
    %vm196 = vcmp.lt.s32.totalorder %v195, 0
    %v197 = vsub.s32 0, %v195
    %v198 = vsel %vm196, %v197, %v195
    %v199 = vclz %v198
    %v200 = vsub.s32 %v199, 2
    %vm201 = vcmp.gt.s32.totalorder 0, %v200
    %v202 = vsel %vm201, 0, %v200
    %v203 = vsub.s32 32, %v202
    %v204 = vshll.u32 %v195, %v202
    %v205 = vshrl.u32 %v187, %v203
    %v206 = vor.u32 %v204, %v205
    %v207 = vsub.s32 4294967266, %v202
    %v208 = vadd.s32 %v207, 127
    %v209 = vshll.u32 %v208, 23
    %v210 = vor.u32 4788187, %v209
    %v211 = vand.u32 2147483647, %v210
    %v213 = vcvt.s32.f32 %v206
    %v214 = vmul.f32 %v213, %v211
    %v215 = vxor.u32 %v214, 2147483648
    %v216 = vsel %vm133, %v215, %v214
    %v217 = vsub.s32 4, %v193
    %v218 = vsel %vm133, %v217, %v193
    %v219 = vsel %vm132, %v123, %v216
    %v220 = vsel %vm132, 0, %v218
    %v221 = vcosq.f32.pop %v219
    %v222 = vsinq.f32.pop %v219
    %vm223 = vweird.f32 %v123
    %v224 = vadd.s32 %v220, 3
    %v225 = vand.u32 %v224, 3
    %vm226 = vcmp.lt.s32.totalorder %v225, 2
    %vm227 = vcmp.eq.s32.totalorder %v225, 0
    %v228 = vxor.u32 %v222, 2147483648
    %v229 = vsel %vm227, %v221, %v228
    %vm230 = vcmp.eq.s32.totalorder %v225, 2
    %v231 = vxor.u32 %v221, 2147483648
    %v232 = vsel %vm230, %v231, %v222
    %v233 = vsel %vm226, %v229, %v232
    %v234 = vsel %vm223, nan, %v233
    %v235 = vand.u32 2147483647, %v124
    %vm236 = vcmp.le.f32.partialorder %v235, 0.7853982
    %vm237 = vcmp.lt.s32.totalorder %v124, 0
    %v238 = vand.u32 %v124, 2139095040
    %v239 = vshrl.u32 %v238, 23
    %v240 = vsub.s32 %v239, 127
    %v241 = vand.u32 2147483647, %v124
    %v242 = vand.u32 %v241, 8388607
    %v243 = vor.u32 %v242, 8388608
    %v244 = vsub.s32 0, %v243
    %v245 = vadd.s32 %v240, 1
    %vm246 = vcmp.gt.s32.totalorder %v245, 0
    %v247 = vsel %vm246, %v245, 0
    %v248 = vshrl.u32 %v247, 5
    %v249 = vand.u32 %v247, 31
    %v250 = vsub.s32 32, %v249
    %v251 = vshrl.u32 683565275, %v250
    %v252 = vshll.u32 683565275, %v249
    %v253 = vshrl.u32 2475754826, %v250
    %v254 = vor.u32 %v252, %v253
    %v255 = vshll.u32 2475754826, %v249
    %v256 = vshrl.u32 2131351028, %v250
    %v257 = vor.u32 %v255, %v256
    %v258 = vshll.u32 2131351028, %v249
    %v259 = vshrl.u32 2102212464, %v250
    %v260 = vor.u32 %v258, %v259
    %v261 = vshll.u32 2102212464, %v249
    %v262 = vshrl.u32 920167782, %v250
    %v263 = vor.u32 %v261, %v262
    %v264 = vshll.u32 920167782, %v249
    %v265 = vshrl.u32 1326507024, %v250
    %v266 = vor.u32 %v264, %v265
    %vm267 = vcmp.lt.s32.totalorder %v248, 1
    %vm268 = vcmp.lt.s32.totalorder %v248, 2
    %vm269 = vcmp.lt.s32.totalorder %v248, 3
    %vm270 = vcmp.lt.s32.totalorder %v248, 4
    %v271 = vsel %vm267, %v251, %v254
    %v272 = vsel %vm270, %v260, 2102212464
    %v273 = vsel %vm269, %v257, %v272
    %v274 = vsel %vm268, %v271, %v273
    %v275 = vsel %vm267, %v254, %v257
    %v276 = vsel %vm270, %v263, 920167782
    %v277 = vsel %vm269, %v260, %v276
    %v278 = vsel %vm268, %v275, %v277
    %v279 = vsel %vm267, %v257, %v260
    %v280 = vsel %vm270, %v266, 1326507024
    %v281 = vsel %vm269, %v263, %v280
    %v282 = vsel %vm268, %v279, %v281
    %v283 = vshll.u32 %v243, 8
    %v284 = vmul.u32.u64.compose %v283, %v282
    %v285 = vextract.low.u32 %v284
    %v286 = vextract.high.u32 %v284
    %v287 = vmul.u32.u64.compose %v283, %v278
    %v288 = vextract.low.u32 %v287
    %v289 = vextract.high.u32 %v287
    %v290 = vmul.u32 %v283, %v274
    %v291 = vadd.s32 %v286, %v288
    %vm292 = vc.u32 %v286, %v288
    %v293 = vadd.s32 %v289, 1
    %v294 = vsel %vm292, %v293, %v289
    %v295 = vadd.s32 %v290, %v294
    %v296 = vadd.s32 %v295, 536870912
    %v297 = vshrl.u32 %v296, 30
    %v298 = vshll.u32 %v297, 30
    %v299 = vsub.s32 %v295, %v298
    %vm300 = vcmp.lt.s32.totalorder %v299, 0
    %v301 = vsub.s32 0, %v299
    %v302 = vsel %vm300, %v301, %v299
    %v303 = vclz %v302
    %v304 = vsub.s32 %v303, 2
    %vm305 = vcmp.gt.s32.totalorder 0, %v304
    %v306 = vsel %vm305, 0, %v304
    %v307 = vsub.s32 32, %v306
    %v308 = vshll.u32 %v299, %v306
    %v309 = vshrl.u32 %v291, %v307
    %v310 = vor.u32 %v308, %v309
    %v311 = vsub.s32 4294967266, %v306
    %v312 = vadd.s32 %v311, 127
    %v313 = vshll.u32 %v312, 23
    %v314 = vor.u32 4788187, %v313
    %v315 = vand.u32 2147483647, %v314
    %v317 = vcvt.s32.f32 %v310
    %v318 = vmul.f32 %v317, %v315
    %v319 = vxor.u32 %v318, 2147483648
    %v320 = vsel %vm237, %v319, %v318
    %v321 = vsub.s32 4, %v297
    %v322 = vsel %vm237, %v321, %v297
    %v323 = vsel %vm236, %v124, %v320
    %v324 = vsel %vm236, 0, %v322
    %v325 = vcosq.f32.pop %v323
    %v326 = vsinq.f32.pop %v323
    %vm327 = vweird.f32 %v124
    %v328 = vadd.s32 %v324, 3
    %v329 = vand.u32 %v328, 3
    %vm330 = vcmp.lt.s32.totalorder %v329, 2
    %vm331 = vcmp.eq.s32.totalorder %v329, 0
    %v332 = vxor.u32 %v326, 2147483648
    %v333 = vsel %vm331, %v325, %v332
    %vm334 = vcmp.eq.s32.totalorder %v329, 2
    %v335 = vxor.u32 %v325, 2147483648
    %v336 = vsel %vm334, %v335, %v326
    %v337 = vsel %vm330, %v333, %v336
    %v338 = vsel %vm327, nan, %v337
    %v339 = vand.u32 2147483647, %v125
    %vm340 = vcmp.le.f32.partialorder %v339, 0.7853982
    %vm341 = vcmp.lt.s32.totalorder %v125, 0
    %v342 = vand.u32 %v125, 2139095040
    %v343 = vshrl.u32 %v342, 23
    %v344 = vsub.s32 %v343, 127
    %v345 = vand.u32 2147483647, %v125
    %v346 = vand.u32 %v345, 8388607
    %v347 = vor.u32 %v346, 8388608
    %v348 = vsub.s32 0, %v347
    %v349 = vadd.s32 %v344, 1
    %vm350 = vcmp.gt.s32.totalorder %v349, 0
    %v351 = vsel %vm350, %v349, 0
    %v352 = vshrl.u32 %v351, 5
    %v353 = vand.u32 %v351, 31
    %v354 = vsub.s32 32, %v353
    %v355 = vshrl.u32 683565275, %v354
    %v356 = vshll.u32 683565275, %v353
    %v357 = vshrl.u32 2475754826, %v354
    %v358 = vor.u32 %v356, %v357
    %v359 = vshll.u32 2475754826, %v353
    %v360 = vshrl.u32 2131351028, %v354
    %v361 = vor.u32 %v359, %v360
    %v362 = vshll.u32 2131351028, %v353
    %v363 = vshrl.u32 2102212464, %v354
    %v364 = vor.u32 %v362, %v363
    %v365 = vshll.u32 2102212464, %v353
    %v366 = vshrl.u32 920167782, %v354
    %v367 = vor.u32 %v365, %v366
    %v368 = vshll.u32 920167782, %v353
    %v369 = vshrl.u32 1326507024, %v354
    %v370 = vor.u32 %v368, %v369
    %vm371 = vcmp.lt.s32.totalorder %v352, 1
    %vm372 = vcmp.lt.s32.totalorder %v352, 2
    %vm373 = vcmp.lt.s32.totalorder %v352, 3
    %vm374 = vcmp.lt.s32.totalorder %v352, 4
    %v375 = vsel %vm371, %v355, %v358
    %v376 = vsel %vm374, %v364, 2102212464
    %v377 = vsel %vm373, %v361, %v376
    %v378 = vsel %vm372, %v375, %v377
    %v379 = vsel %vm371, %v358, %v361
    %v380 = vsel %vm374, %v367, 920167782
    %v381 = vsel %vm373, %v364, %v380
    %v382 = vsel %vm372, %v379, %v381
    %v383 = vsel %vm371, %v361, %v364
    %v384 = vsel %vm374, %v370, 1326507024
    %v385 = vsel %vm373, %v367, %v384
    %v386 = vsel %vm372, %v383, %v385
    %v387 = vshll.u32 %v347, 8
    %v388 = vmul.u32.u64.compose %v387, %v386
    %v389 = vextract.low.u32 %v388
    %v390 = vextract.high.u32 %v388
    %v391 = vmul.u32.u64.compose %v387, %v382
    %v392 = vextract.low.u32 %v391
    %v393 = vextract.high.u32 %v391
    %v394 = vmul.u32 %v387, %v378
    %v395 = vadd.s32 %v390, %v392
    %vm396 = vc.u32 %v390, %v392
    %v397 = vadd.s32 %v393, 1
    %v398 = vsel %vm396, %v397, %v393
    %v399 = vadd.s32 %v394, %v398
    %v400 = vadd.s32 %v399, 536870912
    %v401 = vshrl.u32 %v400, 30
    %v402 = vshll.u32 %v401, 30
    %v403 = vsub.s32 %v399, %v402
    %vm404 = vcmp.lt.s32.totalorder %v403, 0
    %v405 = vsub.s32 0, %v403
    %v406 = vsel %vm404, %v405, %v403
    %v407 = vclz %v406
    %v408 = vsub.s32 %v407, 2
    %vm409 = vcmp.gt.s32.totalorder 0, %v408
    %v410 = vsel %vm409, 0, %v408
    %v411 = vsub.s32 32, %v410
    %v412 = vshll.u32 %v403, %v410
    %v413 = vshrl.u32 %v395, %v411
    %v414 = vor.u32 %v412, %v413
    %v415 = vsub.s32 4294967266, %v410
    %v416 = vadd.s32 %v415, 127
    %v417 = vshll.u32 %v416, 23
    %v418 = vor.u32 4788187, %v417
    %v419 = vand.u32 2147483647, %v418
    %v421 = vcvt.s32.f32 %v414
    %v422 = vmul.f32 %v421, %v419
    %v423 = vxor.u32 %v422, 2147483648
    %v424 = vsel %vm341, %v423, %v422
    %v425 = vsub.s32 4, %v401
    %v426 = vsel %vm341, %v425, %v401
    %v427 = vsel %vm340, %v125, %v424
    %v428 = vsel %vm340, 0, %v426
    %v429 = vcosq.f32.pop %v427
    %v430 = vsinq.f32.pop %v427
    %vm431 = vweird.f32 %v125
    %v432 = vadd.s32 %v428, 3
    %v433 = vand.u32 %v432, 3
    %vm434 = vcmp.lt.s32.totalorder %v433, 2
    %vm435 = vcmp.eq.s32.totalorder %v433, 0
    %v436 = vxor.u32 %v430, 2147483648
    %v437 = vsel %vm435, %v429, %v436
    %vm438 = vcmp.eq.s32.totalorder %v433, 2
    %v439 = vxor.u32 %v429, 2147483648
    %v440 = vsel %vm438, %v439, %v430
    %v441 = vsel %vm434, %v437, %v440
    %v442 = vsel %vm431, nan, %v441
    %v443 = vand.u32 2147483647, %v126
    %vm444 = vcmp.le.f32.partialorder %v443, 0.7853982
    %vm445 = vcmp.lt.s32.totalorder %v126, 0
    %v446 = vand.u32 %v126, 2139095040
    %v447 = vshrl.u32 %v446, 23
    %v448 = vsub.s32 %v447, 127
    %v449 = vand.u32 2147483647, %v126
    %v450 = vand.u32 %v449, 8388607
    %v451 = vor.u32 %v450, 8388608
    %v452 = vsub.s32 0, %v451
    %v453 = vadd.s32 %v448, 1
    %vm454 = vcmp.gt.s32.totalorder %v453, 0
    %v455 = vsel %vm454, %v453, 0
    %v456 = vshrl.u32 %v455, 5
    %v457 = vand.u32 %v455, 31
    %v458 = vsub.s32 32, %v457
    %v459 = vshrl.u32 683565275, %v458
    %v460 = vshll.u32 683565275, %v457
    %v461 = vshrl.u32 2475754826, %v458
    %v462 = vor.u32 %v460, %v461
    %v463 = vshll.u32 2475754826, %v457
    %v464 = vshrl.u32 2131351028, %v458
    %v465 = vor.u32 %v463, %v464
    %v466 = vshll.u32 2131351028, %v457
    %v467 = vshrl.u32 2102212464, %v458
    %v468 = vor.u32 %v466, %v467
    %v469 = vshll.u32 2102212464, %v457
    %v470 = vshrl.u32 920167782, %v458
    %v471 = vor.u32 %v469, %v470
    %v472 = vshll.u32 920167782, %v457
    %v473 = vshrl.u32 1326507024, %v458
    %v474 = vor.u32 %v472, %v473
    %vm475 = vcmp.lt.s32.totalorder %v456, 1
    %vm476 = vcmp.lt.s32.totalorder %v456, 2
    %vm477 = vcmp.lt.s32.totalorder %v456, 3
    %vm478 = vcmp.lt.s32.totalorder %v456, 4
    %v479 = vsel %vm475, %v459, %v462
    %v480 = vsel %vm478, %v468, 2102212464
    %v481 = vsel %vm477, %v465, %v480
    %v482 = vsel %vm476, %v479, %v481
    %v483 = vsel %vm475, %v462, %v465
    %v484 = vsel %vm478, %v471, 920167782
    %v485 = vsel %vm477, %v468, %v484
    %v486 = vsel %vm476, %v483, %v485
    %v487 = vsel %vm475, %v465, %v468
    %v488 = vsel %vm478, %v474, 1326507024
    %v489 = vsel %vm477, %v471, %v488
    %v490 = vsel %vm476, %v487, %v489
    %v491 = vshll.u32 %v451, 8
    %v492 = vmul.u32.u64.compose %v491, %v490
    %v493 = vextract.low.u32 %v492
    %v494 = vextract.high.u32 %v492
    %v495 = vmul.u32.u64.compose %v491, %v486
    %v496 = vextract.low.u32 %v495
    %v497 = vextract.high.u32 %v495
    %v498 = vmul.u32 %v491, %v482
    %v499 = vadd.s32 %v494, %v496
    %vm500 = vc.u32 %v494, %v496
    %v501 = vadd.s32 %v497, 1
    %v502 = vsel %vm500, %v501, %v497
    %v503 = vadd.s32 %v498, %v502
    %v504 = vadd.s32 %v503, 536870912
    %v505 = vshrl.u32 %v504, 30
    %v506 = vshll.u32 %v505, 30
    %v507 = vsub.s32 %v503, %v506
    %vm508 = vcmp.lt.s32.totalorder %v507, 0
    %v509 = vsub.s32 0, %v507
    %v510 = vsel %vm508, %v509, %v507
    %v511 = vclz %v510
    %v512 = vsub.s32 %v511, 2
    %vm513 = vcmp.gt.s32.totalorder 0, %v512
    %v514 = vsel %vm513, 0, %v512
    %v515 = vsub.s32 32, %v514
    %v516 = vshll.u32 %v507, %v514
    %v517 = vshrl.u32 %v499, %v515
    %v518 = vor.u32 %v516, %v517
    %v519 = vsub.s32 4294967266, %v514
    %v520 = vadd.s32 %v519, 127
    %v521 = vshll.u32 %v520, 23
    %v522 = vor.u32 4788187, %v521
    %v523 = vand.u32 2147483647, %v522
    %v525 = vcvt.s32.f32 %v518
    %v526 = vmul.f32 %v525, %v523
    %v527 = vxor.u32 %v526, 2147483648
    %v528 = vsel %vm445, %v527, %v526
    %v529 = vsub.s32 4, %v505
    %v530 = vsel %vm445, %v529, %v505
    %v531 = vsel %vm444, %v126, %v528
    %v532 = vsel %vm444, 0, %v530
    %v533 = vcosq.f32.pop %v531
    %v534 = vsinq.f32.pop %v531
    %vm535 = vweird.f32 %v126
    %v536 = vadd.s32 %v532, 3
    %v537 = vand.u32 %v536, 3
    %vm538 = vcmp.lt.s32.totalorder %v537, 2
    %vm539 = vcmp.eq.s32.totalorder %v537, 0
    %v540 = vxor.u32 %v534, 2147483648
    %v541 = vsel %vm539, %v533, %v540
    %vm542 = vcmp.eq.s32.totalorder %v537, 2
    %v543 = vxor.u32 %v533, 2147483648
    %v544 = vsel %vm542, %v543, %v534
    %v545 = vsel %vm538, %v541, %v544
    %v546 = vsel %vm535, nan, %v545
    %v547 = vand.u32 2147483647, %v127
    %vm548 = vcmp.le.f32.partialorder %v547, 0.7853982
    %vm549 = vcmp.lt.s32.totalorder %v127, 0
    %v550 = vand.u32 %v127, 2139095040
    %v551 = vshrl.u32 %v550, 23
    %v552 = vsub.s32 %v551, 127
    %v553 = vand.u32 2147483647, %v127
    %v554 = vand.u32 %v553, 8388607
    %v555 = vor.u32 %v554, 8388608
    %v556 = vsub.s32 0, %v555
    %v557 = vadd.s32 %v552, 1
    %vm558 = vcmp.gt.s32.totalorder %v557, 0
    %v559 = vsel %vm558, %v557, 0
    %v560 = vshrl.u32 %v559, 5
    %v561 = vand.u32 %v559, 31
    %v562 = vsub.s32 32, %v561
    %v563 = vshrl.u32 683565275, %v562
    %v564 = vshll.u32 683565275, %v561
    %v565 = vshrl.u32 2475754826, %v562
    %v566 = vor.u32 %v564, %v565
    %v567 = vshll.u32 2475754826, %v561
    %v568 = vshrl.u32 2131351028, %v562
    %v569 = vor.u32 %v567, %v568
    %v570 = vshll.u32 2131351028, %v561
    %v571 = vshrl.u32 2102212464, %v562
    %v572 = vor.u32 %v570, %v571
    %v573 = vshll.u32 2102212464, %v561
    %v574 = vshrl.u32 920167782, %v562
    %v575 = vor.u32 %v573, %v574
    %v576 = vshll.u32 920167782, %v561
    %v577 = vshrl.u32 1326507024, %v562
    %v578 = vor.u32 %v576, %v577
    %vm579 = vcmp.lt.s32.totalorder %v560, 1
    %vm580 = vcmp.lt.s32.totalorder %v560, 2
    %vm581 = vcmp.lt.s32.totalorder %v560, 3
    %vm582 = vcmp.lt.s32.totalorder %v560, 4
    %v583 = vsel %vm579, %v563, %v566
    %v584 = vsel %vm582, %v572, 2102212464
    %v585 = vsel %vm581, %v569, %v584
    %v586 = vsel %vm580, %v583, %v585
    %v587 = vsel %vm579, %v566, %v569
    %v588 = vsel %vm582, %v575, 920167782
    %v589 = vsel %vm581, %v572, %v588
    %v590 = vsel %vm580, %v587, %v589
    %v591 = vsel %vm579, %v569, %v572
    %v592 = vsel %vm582, %v578, 1326507024
    %v593 = vsel %vm581, %v575, %v592
    %v594 = vsel %vm580, %v591, %v593
    %v595 = vshll.u32 %v555, 8
    %v596 = vmul.u32.u64.compose %v595, %v594
    %v597 = vextract.low.u32 %v596
    %v598 = vextract.high.u32 %v596
    %v599 = vmul.u32.u64.compose %v595, %v590
    %v600 = vextract.low.u32 %v599
    %v601 = vextract.high.u32 %v599
    %v602 = vmul.u32 %v595, %v586
    %v603 = vadd.s32 %v598, %v600
    %vm604 = vc.u32 %v598, %v600
    %v605 = vadd.s32 %v601, 1
    %v606 = vsel %vm604, %v605, %v601
    %v607 = vadd.s32 %v602, %v606
    %v608 = vadd.s32 %v607, 536870912
    %v609 = vshrl.u32 %v608, 30
    %v610 = vshll.u32 %v609, 30
    %v611 = vsub.s32 %v607, %v610
    %vm612 = vcmp.lt.s32.totalorder %v611, 0
    %v613 = vsub.s32 0, %v611
    %v614 = vsel %vm612, %v613, %v611
    %v615 = vclz %v614
    %v616 = vsub.s32 %v615, 2
    %vm617 = vcmp.gt.s32.totalorder 0, %v616
    %v618 = vsel %vm617, 0, %v616
    %v619 = vsub.s32 32, %v618
    %v620 = vshll.u32 %v611, %v618
    %v621 = vshrl.u32 %v603, %v619
    %v622 = vor.u32 %v620, %v621
    %v623 = vsub.s32 4294967266, %v618
    %v624 = vadd.s32 %v623, 127
    %v625 = vshll.u32 %v624, 23
    %v626 = vor.u32 4788187, %v625
    %v627 = vand.u32 2147483647, %v626
    %v629 = vcvt.s32.f32 %v622
    %v630 = vmul.f32 %v629, %v627
    %v631 = vxor.u32 %v630, 2147483648
    %v632 = vsel %vm549, %v631, %v630
    %v633 = vsub.s32 4, %v609
    %v634 = vsel %vm549, %v633, %v609
    %v635 = vsel %vm548, %v127, %v632
    %v636 = vsel %vm548, 0, %v634
    %v637 = vcosq.f32.pop %v635
    %v638 = vsinq.f32.pop %v635
    %vm639 = vweird.f32 %v127
    %v640 = vadd.s32 %v636, 3
    %v641 = vand.u32 %v640, 3
    %vm642 = vcmp.lt.s32.totalorder %v641, 2
    %vm643 = vcmp.eq.s32.totalorder %v641, 0
    %v644 = vxor.u32 %v638, 2147483648
    %v645 = vsel %vm643, %v637, %v644
    %vm646 = vcmp.eq.s32.totalorder %v641, 2
    %v647 = vxor.u32 %v637, 2147483648
    %v648 = vsel %vm646, %v647, %v638
    %v649 = vsel %vm642, %v645, %v648
    %v650 = vsel %vm639, nan, %v649
    %v651 = vand.u32 2147483647, %v128
    %vm652 = vcmp.le.f32.partialorder %v651, 0.7853982
    %vm653 = vcmp.lt.s32.totalorder %v128, 0
    %v654 = vand.u32 %v128, 2139095040
    %v655 = vshrl.u32 %v654, 23
    %v656 = vsub.s32 %v655, 127
    %v657 = vand.u32 2147483647, %v128
    %v658 = vand.u32 %v657, 8388607
    %v659 = vor.u32 %v658, 8388608
    %v660 = vsub.s32 0, %v659
    %v661 = vadd.s32 %v656, 1
    %vm662 = vcmp.gt.s32.totalorder %v661, 0
    %v663 = vsel %vm662, %v661, 0
    %v664 = vshrl.u32 %v663, 5
    %v665 = vand.u32 %v663, 31
    %v666 = vsub.s32 32, %v665
    %v667 = vshrl.u32 683565275, %v666
    %v668 = vshll.u32 683565275, %v665
    %v669 = vshrl.u32 2475754826, %v666
    %v670 = vor.u32 %v668, %v669
    %v671 = vshll.u32 2475754826, %v665
    %v672 = vshrl.u32 2131351028, %v666
    %v673 = vor.u32 %v671, %v672
    %v674 = vshll.u32 2131351028, %v665
    %v675 = vshrl.u32 2102212464, %v666
    %v676 = vor.u32 %v674, %v675
    %v677 = vshll.u32 2102212464, %v665
    %v678 = vshrl.u32 920167782, %v666
    %v679 = vor.u32 %v677, %v678
    %v680 = vshll.u32 920167782, %v665
    %v681 = vshrl.u32 1326507024, %v666
    %v682 = vor.u32 %v680, %v681
    %vm683 = vcmp.lt.s32.totalorder %v664, 1
    %vm684 = vcmp.lt.s32.totalorder %v664, 2
    %vm685 = vcmp.lt.s32.totalorder %v664, 3
    %vm686 = vcmp.lt.s32.totalorder %v664, 4
    %v687 = vsel %vm683, %v667, %v670
    %v688 = vsel %vm686, %v676, 2102212464
    %v689 = vsel %vm685, %v673, %v688
    %v690 = vsel %vm684, %v687, %v689
    %v691 = vsel %vm683, %v670, %v673
    %v692 = vsel %vm686, %v679, 920167782
    %v693 = vsel %vm685, %v676, %v692
    %v694 = vsel %vm684, %v691, %v693
    %v695 = vsel %vm683, %v673, %v676
    %v696 = vsel %vm686, %v682, 1326507024
    %v697 = vsel %vm685, %v679, %v696
    %v698 = vsel %vm684, %v695, %v697
    %v699 = vshll.u32 %v659, 8
    %v700 = vmul.u32.u64.compose %v699, %v698
    %v701 = vextract.low.u32 %v700
    %v702 = vextract.high.u32 %v700
    %v703 = vmul.u32.u64.compose %v699, %v694
    %v704 = vextract.low.u32 %v703
    %v705 = vextract.high.u32 %v703
    %v706 = vmul.u32 %v699, %v690
    %v707 = vadd.s32 %v702, %v704
    %vm708 = vc.u32 %v702, %v704
    %v709 = vadd.s32 %v705, 1
    %v710 = vsel %vm708, %v709, %v705
    %v711 = vadd.s32 %v706, %v710
    %v712 = vadd.s32 %v711, 536870912
    %v713 = vshrl.u32 %v712, 30
    %v714 = vshll.u32 %v713, 30
    %v715 = vsub.s32 %v711, %v714
    %vm716 = vcmp.lt.s32.totalorder %v715, 0
    %v717 = vsub.s32 0, %v715
    %v718 = vsel %vm716, %v717, %v715
    %v719 = vclz %v718
    %v720 = vsub.s32 %v719, 2
    %vm721 = vcmp.gt.s32.totalorder 0, %v720
    %v722 = vsel %vm721, 0, %v720
    %v723 = vsub.s32 32, %v722
    %v724 = vshll.u32 %v715, %v722
    %v725 = vshrl.u32 %v707, %v723
    %v726 = vor.u32 %v724, %v725
    %v727 = vsub.s32 4294967266, %v722
    %v728 = vadd.s32 %v727, 127
    %v729 = vshll.u32 %v728, 23
    %v730 = vor.u32 4788187, %v729
    %v731 = vand.u32 2147483647, %v730
    %v733 = vcvt.s32.f32 %v726
    %v734 = vmul.f32 %v733, %v731
    %v735 = vxor.u32 %v734, 2147483648
    %v736 = vsel %vm653, %v735, %v734
    %v737 = vsub.s32 4, %v713
    %v738 = vsel %vm653, %v737, %v713
    %v739 = vsel %vm652, %v128, %v736
    %v740 = vsel %vm652, 0, %v738
    %v741 = vcosq.f32.pop %v739
    %v742 = vsinq.f32.pop %v739
    %vm743 = vweird.f32 %v128
    %v744 = vadd.s32 %v740, 3
    %v745 = vand.u32 %v744, 3
    %vm746 = vcmp.lt.s32.totalorder %v745, 2
    %vm747 = vcmp.eq.s32.totalorder %v745, 0
    %v748 = vxor.u32 %v742, 2147483648
    %v749 = vsel %vm747, %v741, %v748
    %vm750 = vcmp.eq.s32.totalorder %v745, 2
    %v751 = vxor.u32 %v741, 2147483648
    %v752 = vsel %vm750, %v751, %v742
    %v753 = vsel %vm746, %v749, %v752
    %v754 = vsel %vm743, nan, %v753
    %v755 = vand.u32 2147483647, %v129
    %vm756 = vcmp.le.f32.partialorder %v755, 0.7853982
    %vm757 = vcmp.lt.s32.totalorder %v129, 0
    %v758 = vand.u32 %v129, 2139095040
    %v759 = vshrl.u32 %v758, 23
    %v760 = vsub.s32 %v759, 127
    %v761 = vand.u32 2147483647, %v129
    %v762 = vand.u32 %v761, 8388607
    %v763 = vor.u32 %v762, 8388608
    %v764 = vsub.s32 0, %v763
    %v765 = vadd.s32 %v760, 1
    %vm766 = vcmp.gt.s32.totalorder %v765, 0
    %v767 = vsel %vm766, %v765, 0
    %v768 = vshrl.u32 %v767, 5
    %v769 = vand.u32 %v767, 31
    %v770 = vsub.s32 32, %v769
    %v771 = vshrl.u32 683565275, %v770
    %v772 = vshll.u32 683565275, %v769
    %v773 = vshrl.u32 2475754826, %v770
    %v774 = vor.u32 %v772, %v773
    %v775 = vshll.u32 2475754826, %v769
    %v776 = vshrl.u32 2131351028, %v770
    %v777 = vor.u32 %v775, %v776
    %v778 = vshll.u32 2131351028, %v769
    %v779 = vshrl.u32 2102212464, %v770
    %v780 = vor.u32 %v778, %v779
    %v781 = vshll.u32 2102212464, %v769
    %v782 = vshrl.u32 920167782, %v770
    %v783 = vor.u32 %v781, %v782
    %v784 = vshll.u32 920167782, %v769
    %v785 = vshrl.u32 1326507024, %v770
    %v786 = vor.u32 %v784, %v785
    %vm787 = vcmp.lt.s32.totalorder %v768, 1
    %vm788 = vcmp.lt.s32.totalorder %v768, 2
    %vm789 = vcmp.lt.s32.totalorder %v768, 3
    %vm790 = vcmp.lt.s32.totalorder %v768, 4
    %v791 = vsel %vm787, %v771, %v774
    %v792 = vsel %vm790, %v780, 2102212464
    %v793 = vsel %vm789, %v777, %v792
    %v794 = vsel %vm788, %v791, %v793
    %v795 = vsel %vm787, %v774, %v777
    %v796 = vsel %vm790, %v783, 920167782
    %v797 = vsel %vm789, %v780, %v796
    %v798 = vsel %vm788, %v795, %v797
    %v799 = vsel %vm787, %v777, %v780
    %v800 = vsel %vm790, %v786, 1326507024
    %v801 = vsel %vm789, %v783, %v800
    %v802 = vsel %vm788, %v799, %v801
    %v803 = vshll.u32 %v763, 8
    %v804 = vmul.u32.u64.compose %v803, %v802
    %v805 = vextract.low.u32 %v804
    %v806 = vextract.high.u32 %v804
    %v807 = vmul.u32.u64.compose %v803, %v798
    %v808 = vextract.low.u32 %v807
    %v809 = vextract.high.u32 %v807
    %v810 = vmul.u32 %v803, %v794
    %v811 = vadd.s32 %v806, %v808
    %vm812 = vc.u32 %v806, %v808
    %v813 = vadd.s32 %v809, 1
    %v814 = vsel %vm812, %v813, %v809
    %v815 = vadd.s32 %v810, %v814
    %v816 = vadd.s32 %v815, 536870912
    %v817 = vshrl.u32 %v816, 30
    %v818 = vshll.u32 %v817, 30
    %v819 = vsub.s32 %v815, %v818
    %vm820 = vcmp.lt.s32.totalorder %v819, 0
    %v821 = vsub.s32 0, %v819
    %v822 = vsel %vm820, %v821, %v819
    %v823 = vclz %v822
    %v824 = vsub.s32 %v823, 2
    %vm825 = vcmp.gt.s32.totalorder 0, %v824
    %v826 = vsel %vm825, 0, %v824
    %v827 = vsub.s32 32, %v826
    %v828 = vshll.u32 %v819, %v826
    %v829 = vshrl.u32 %v811, %v827
    %v830 = vor.u32 %v828, %v829
    %v831 = vsub.s32 4294967266, %v826
    %v832 = vadd.s32 %v831, 127
    %v833 = vshll.u32 %v832, 23
    %v834 = vor.u32 4788187, %v833
    %v835 = vand.u32 2147483647, %v834
    %v837 = vcvt.s32.f32 %v830
    %v838 = vmul.f32 %v837, %v835
    %v839 = vxor.u32 %v838, 2147483648
    %v840 = vsel %vm757, %v839, %v838
    %v841 = vsub.s32 4, %v817
    %v842 = vsel %vm757, %v841, %v817
    %v843 = vsel %vm756, %v129, %v840
    %v844 = vsel %vm756, 0, %v842
    %v845 = vcosq.f32.pop %v843
    %v846 = vsinq.f32.pop %v843
    %vm847 = vweird.f32 %v129
    %v848 = vadd.s32 %v844, 3
    %v849 = vand.u32 %v848, 3
    %vm850 = vcmp.lt.s32.totalorder %v849, 2
    %vm851 = vcmp.eq.s32.totalorder %v849, 0
    %v852 = vxor.u32 %v846, 2147483648
    %v853 = vsel %vm851, %v845, %v852
    %vm854 = vcmp.eq.s32.totalorder %v849, 2
    %v855 = vxor.u32 %v845, 2147483648
    %v856 = vsel %vm854, %v855, %v846
    %v857 = vsel %vm850, %v853, %v856
    %v858 = vsel %vm847, nan, %v857
    %v859 = vand.u32 2147483647, %v130
    %vm860 = vcmp.le.f32.partialorder %v859, 0.7853982
    %vm861 = vcmp.lt.s32.totalorder %v130, 0
    %v862 = vand.u32 %v130, 2139095040
    %v863 = vshrl.u32 %v862, 23
    %v864 = vsub.s32 %v863, 127
    %v865 = vand.u32 2147483647, %v130
    %v866 = vand.u32 %v865, 8388607
    %v867 = vor.u32 %v866, 8388608
    %v868 = vsub.s32 0, %v867
    %v869 = vadd.s32 %v864, 1
    %vm870 = vcmp.gt.s32.totalorder %v869, 0
    %v871 = vsel %vm870, %v869, 0
    %v872 = vshrl.u32 %v871, 5
    %v873 = vand.u32 %v871, 31
    %v874 = vsub.s32 32, %v873
    %v875 = vshrl.u32 683565275, %v874
    %v876 = vshll.u32 683565275, %v873
    %v877 = vshrl.u32 2475754826, %v874
    %v878 = vor.u32 %v876, %v877
    %v879 = vshll.u32 2475754826, %v873
    %v880 = vshrl.u32 2131351028, %v874
    %v881 = vor.u32 %v879, %v880
    %v882 = vshll.u32 2131351028, %v873
    %v883 = vshrl.u32 2102212464, %v874
    %v884 = vor.u32 %v882, %v883
    %v885 = vshll.u32 2102212464, %v873
    %v886 = vshrl.u32 920167782, %v874
    %v887 = vor.u32 %v885, %v886
    %v888 = vshll.u32 920167782, %v873
    %v889 = vshrl.u32 1326507024, %v874
    %v890 = vor.u32 %v888, %v889
    %vm891 = vcmp.lt.s32.totalorder %v872, 1
    %vm892 = vcmp.lt.s32.totalorder %v872, 2
    %vm893 = vcmp.lt.s32.totalorder %v872, 3
    %vm894 = vcmp.lt.s32.totalorder %v872, 4
    %v895 = vsel %vm891, %v875, %v878
    %v896 = vsel %vm894, %v884, 2102212464
    %v897 = vsel %vm893, %v881, %v896
    %v898 = vsel %vm892, %v895, %v897
    %v899 = vsel %vm891, %v878, %v881
    %v900 = vsel %vm894, %v887, 920167782
    %v901 = vsel %vm893, %v884, %v900
    %v902 = vsel %vm892, %v899, %v901
    %v903 = vsel %vm891, %v881, %v884
    %v904 = vsel %vm894, %v890, 1326507024
    %v905 = vsel %vm893, %v887, %v904
    %v906 = vsel %vm892, %v903, %v905
    %v907 = vshll.u32 %v867, 8
    %v908 = vmul.u32.u64.compose %v907, %v906
    %v909 = vextract.low.u32 %v908
    %v910 = vextract.high.u32 %v908
    %v911 = vmul.u32.u64.compose %v907, %v902
    %v912 = vextract.low.u32 %v911
    %v913 = vextract.high.u32 %v911
    %v914 = vmul.u32 %v907, %v898
    %v915 = vadd.s32 %v910, %v912
    %vm916 = vc.u32 %v910, %v912
    %v917 = vadd.s32 %v913, 1
    %v918 = vsel %vm916, %v917, %v913
    %v919 = vadd.s32 %v914, %v918
    %v920 = vadd.s32 %v919, 536870912
    %v921 = vshrl.u32 %v920, 30
    %v922 = vshll.u32 %v921, 30
    %v923 = vsub.s32 %v919, %v922
    %vm924 = vcmp.lt.s32.totalorder %v923, 0
    %v925 = vsub.s32 0, %v923
    %v926 = vsel %vm924, %v925, %v923
    %v927 = vclz %v926
    %v928 = vsub.s32 %v927, 2
    %vm929 = vcmp.gt.s32.totalorder 0, %v928
    %v930 = vsel %vm929, 0, %v928
    %v931 = vsub.s32 32, %v930
    %v932 = vshll.u32 %v923, %v930
    %v933 = vshrl.u32 %v915, %v931
    %v934 = vor.u32 %v932, %v933
    %v935 = vsub.s32 4294967266, %v930
    %v936 = vadd.s32 %v935, 127
    %v937 = vshll.u32 %v936, 23
    %v938 = vor.u32 4788187, %v937
    %v939 = vand.u32 2147483647, %v938
    %v941 = vcvt.s32.f32 %v934
    %v942 = vmul.f32 %v941, %v939
    %v943 = vxor.u32 %v942, 2147483648
    %v944 = vsel %vm861, %v943, %v942
    %v945 = vsub.s32 4, %v921
    %v946 = vsel %vm861, %v945, %v921
    %v947 = vsel %vm860, %v130, %v944
    %v948 = vsel %vm860, 0, %v946
    %v949 = vcosq.f32.pop %v947
    %v950 = vsinq.f32.pop %v947
    %vm951 = vweird.f32 %v130
    %v952 = vadd.s32 %v948, 3
    %v953 = vand.u32 %v952, 3
    %vm954 = vcmp.lt.s32.totalorder %v953, 2
    %vm955 = vcmp.eq.s32.totalorder %v953, 0
    %v956 = vxor.u32 %v950, 2147483648
    %v957 = vsel %vm955, %v949, %v956
    %vm958 = vcmp.eq.s32.totalorder %v953, 2
    %v959 = vxor.u32 %v949, 2147483648
    %v960 = vsel %vm958, %v959, %v950
    %v961 = vsel %vm954, %v957, %v960
    %v962 = vsel %vm951, nan, %v961
    %v963 = vand.u32 2147483647, %v123
    %vm964 = vcmp.le.f32.partialorder %v963, 0.7853982
    %vm965 = vcmp.lt.s32.totalorder %v123, 0
    %v966 = vand.u32 %v123, 2139095040
    %v967 = vshrl.u32 %v966, 23
    %v968 = vsub.s32 %v967, 127
    %v969 = vand.u32 2147483647, %v123
    %v970 = vand.u32 %v969, 8388607
    %v971 = vor.u32 %v970, 8388608
    %v972 = vsub.s32 0, %v971
    %v973 = vadd.s32 %v968, 1
    %vm974 = vcmp.gt.s32.totalorder %v973, 0
    %v975 = vsel %vm974, %v973, 0
    %v976 = vshrl.u32 %v975, 5
    %v977 = vand.u32 %v975, 31
    %v978 = vsub.s32 32, %v977
    %v979 = vshrl.u32 683565275, %v978
    %v980 = vshll.u32 683565275, %v977
    %v981 = vshrl.u32 2475754826, %v978
    %v982 = vor.u32 %v980, %v981
    %v983 = vshll.u32 2475754826, %v977
    %v984 = vshrl.u32 2131351028, %v978
    %v985 = vor.u32 %v983, %v984
    %v986 = vshll.u32 2131351028, %v977
    %v987 = vshrl.u32 2102212464, %v978
    %v988 = vor.u32 %v986, %v987
    %v989 = vshll.u32 2102212464, %v977
    %v990 = vshrl.u32 920167782, %v978
    %v991 = vor.u32 %v989, %v990
    %v992 = vshll.u32 920167782, %v977
    %v993 = vshrl.u32 1326507024, %v978
    %v994 = vor.u32 %v992, %v993
    %vm995 = vcmp.lt.s32.totalorder %v976, 1
    %vm996 = vcmp.lt.s32.totalorder %v976, 2
    %vm997 = vcmp.lt.s32.totalorder %v976, 3
    %vm998 = vcmp.lt.s32.totalorder %v976, 4
    %v999 = vsel %vm995, %v979, %v982
    %v1000 = vsel %vm998, %v988, 2102212464
    %v1001 = vsel %vm997, %v985, %v1000
    %v1002 = vsel %vm996, %v999, %v1001
    %v1003 = vsel %vm995, %v982, %v985
    %v1004 = vsel %vm998, %v991, 920167782
    %v1005 = vsel %vm997, %v988, %v1004
    %v1006 = vsel %vm996, %v1003, %v1005
    %v1007 = vsel %vm995, %v985, %v988
    %v1008 = vsel %vm998, %v994, 1326507024
    %v1009 = vsel %vm997, %v991, %v1008
    %v1010 = vsel %vm996, %v1007, %v1009
    %v1011 = vshll.u32 %v971, 8
    %v1012 = vmul.u32.u64.compose %v1011, %v1010
    %v1013 = vextract.low.u32 %v1012
    %v1014 = vextract.high.u32 %v1012
    %v1015 = vmul.u32.u64.compose %v1011, %v1006
    %v1016 = vextract.low.u32 %v1015
    %v1017 = vextract.high.u32 %v1015
    %v1018 = vmul.u32 %v1011, %v1002
    %v1019 = vadd.s32 %v1014, %v1016
    %vm1020 = vc.u32 %v1014, %v1016
    %v1021 = vadd.s32 %v1017, 1
    %v1022 = vsel %vm1020, %v1021, %v1017
    %v1023 = vadd.s32 %v1018, %v1022
    %v1024 = vadd.s32 %v1023, 536870912
    %v1025 = vshrl.u32 %v1024, 30
    %v1026 = vshll.u32 %v1025, 30
    %v1027 = vsub.s32 %v1023, %v1026
    %vm1028 = vcmp.lt.s32.totalorder %v1027, 0
    %v1029 = vsub.s32 0, %v1027
    %v1030 = vsel %vm1028, %v1029, %v1027
    %v1031 = vclz %v1030
    %v1032 = vsub.s32 %v1031, 2
    %vm1033 = vcmp.gt.s32.totalorder 0, %v1032
    %v1034 = vsel %vm1033, 0, %v1032
    %v1035 = vsub.s32 32, %v1034
    %v1036 = vshll.u32 %v1027, %v1034
    %v1037 = vshrl.u32 %v1019, %v1035
    %v1038 = vor.u32 %v1036, %v1037
    %v1039 = vsub.s32 4294967266, %v1034
    %v1040 = vadd.s32 %v1039, 127
    %v1041 = vshll.u32 %v1040, 23
    %v1042 = vor.u32 4788187, %v1041
    %v1043 = vand.u32 2147483647, %v1042
    %v1045 = vcvt.s32.f32 %v1038
    %v1046 = vmul.f32 %v1045, %v1043
    %v1047 = vxor.u32 %v1046, 2147483648
    %v1048 = vsel %vm965, %v1047, %v1046
    %v1049 = vsub.s32 4, %v1025
    %v1050 = vsel %vm965, %v1049, %v1025
    %v1051 = vsel %vm964, %v123, %v1048
    %v1052 = vsel %vm964, 0, %v1050
    %v1053 = vcosq.f32.pop %v1051
    %v1054 = vsinq.f32.pop %v1051
    %vm1055 = vweird.f32 %v123
    %v1056 = vand.u32 %v1052, 3
    %vm1057 = vcmp.lt.s32.totalorder %v1056, 2
    %vm1058 = vcmp.eq.s32.totalorder %v1056, 0
    %v1059 = vxor.u32 %v1054, 2147483648
    %v1060 = vsel %vm1058, %v1053, %v1059
    %vm1061 = vcmp.eq.s32.totalorder %v1056, 2
    %v1062 = vxor.u32 %v1053, 2147483648
    %v1063 = vsel %vm1061, %v1062, %v1054
    %v1064 = vsel %vm1057, %v1060, %v1063
    %v1065 = vsel %vm1055, nan, %v1064
    %v1066 = vand.u32 2147483647, %v124
    %vm1067 = vcmp.le.f32.partialorder %v1066, 0.7853982
    %vm1068 = vcmp.lt.s32.totalorder %v124, 0
    %v1069 = vand.u32 %v124, 2139095040
    %v1070 = vshrl.u32 %v1069, 23
    %v1071 = vsub.s32 %v1070, 127
    %v1072 = vand.u32 2147483647, %v124
    %v1073 = vand.u32 %v1072, 8388607
    %v1074 = vor.u32 %v1073, 8388608
    %v1075 = vsub.s32 0, %v1074
    %v1076 = vadd.s32 %v1071, 1
    %vm1077 = vcmp.gt.s32.totalorder %v1076, 0
    %v1078 = vsel %vm1077, %v1076, 0
    %v1079 = vshrl.u32 %v1078, 5
    %v1080 = vand.u32 %v1078, 31
    %v1081 = vsub.s32 32, %v1080
    %v1082 = vshrl.u32 683565275, %v1081
    %v1083 = vshll.u32 683565275, %v1080
    %v1084 = vshrl.u32 2475754826, %v1081
    %v1085 = vor.u32 %v1083, %v1084
    %v1086 = vshll.u32 2475754826, %v1080
    %v1087 = vshrl.u32 2131351028, %v1081
    %v1088 = vor.u32 %v1086, %v1087
    %v1089 = vshll.u32 2131351028, %v1080
    %v1090 = vshrl.u32 2102212464, %v1081
    %v1091 = vor.u32 %v1089, %v1090
    %v1092 = vshll.u32 2102212464, %v1080
    %v1093 = vshrl.u32 920167782, %v1081
    %v1094 = vor.u32 %v1092, %v1093
    %v1095 = vshll.u32 920167782, %v1080
    %v1096 = vshrl.u32 1326507024, %v1081
    %v1097 = vor.u32 %v1095, %v1096
    %vm1098 = vcmp.lt.s32.totalorder %v1079, 1
    %vm1099 = vcmp.lt.s32.totalorder %v1079, 2
    %vm1100 = vcmp.lt.s32.totalorder %v1079, 3
    %vm1101 = vcmp.lt.s32.totalorder %v1079, 4
    %v1102 = vsel %vm1098, %v1082, %v1085
    %v1103 = vsel %vm1101, %v1091, 2102212464
    %v1104 = vsel %vm1100, %v1088, %v1103
    %v1105 = vsel %vm1099, %v1102, %v1104
    %v1106 = vsel %vm1098, %v1085, %v1088
    %v1107 = vsel %vm1101, %v1094, 920167782
    %v1108 = vsel %vm1100, %v1091, %v1107
    %v1109 = vsel %vm1099, %v1106, %v1108
    %v1110 = vsel %vm1098, %v1088, %v1091
    %v1111 = vsel %vm1101, %v1097, 1326507024
    %v1112 = vsel %vm1100, %v1094, %v1111
    %v1113 = vsel %vm1099, %v1110, %v1112
    %v1114 = vshll.u32 %v1074, 8
    %v1115 = vmul.u32.u64.compose %v1114, %v1113
    %v1116 = vextract.low.u32 %v1115
    %v1117 = vextract.high.u32 %v1115
    %v1118 = vmul.u32.u64.compose %v1114, %v1109
    %v1119 = vextract.low.u32 %v1118
    %v1120 = vextract.high.u32 %v1118
    %v1121 = vmul.u32 %v1114, %v1105
    %v1122 = vadd.s32 %v1117, %v1119
    %vm1123 = vc.u32 %v1117, %v1119
    %v1124 = vadd.s32 %v1120, 1
    %v1125 = vsel %vm1123, %v1124, %v1120
    %v1126 = vadd.s32 %v1121, %v1125
    %v1127 = vadd.s32 %v1126, 536870912
    %v1128 = vshrl.u32 %v1127, 30
    %v1129 = vshll.u32 %v1128, 30
    %v1130 = vsub.s32 %v1126, %v1129
    %vm1131 = vcmp.lt.s32.totalorder %v1130, 0
    %v1132 = vsub.s32 0, %v1130
    %v1133 = vsel %vm1131, %v1132, %v1130
    %v1134 = vclz %v1133
    %v1135 = vsub.s32 %v1134, 2
    %vm1136 = vcmp.gt.s32.totalorder 0, %v1135
    %v1137 = vsel %vm1136, 0, %v1135
    %v1138 = vsub.s32 32, %v1137
    %v1139 = vshll.u32 %v1130, %v1137
    %v1140 = vshrl.u32 %v1122, %v1138
    %v1141 = vor.u32 %v1139, %v1140
    %v1142 = vsub.s32 4294967266, %v1137
    %v1143 = vadd.s32 %v1142, 127
    %v1144 = vshll.u32 %v1143, 23
    %v1145 = vor.u32 4788187, %v1144
    %v1146 = vand.u32 2147483647, %v1145
    %v1148 = vcvt.s32.f32 %v1141
    %v1149 = vmul.f32 %v1148, %v1146
    %v1150 = vxor.u32 %v1149, 2147483648
    %v1151 = vsel %vm1068, %v1150, %v1149
    %v1152 = vsub.s32 4, %v1128
    %v1153 = vsel %vm1068, %v1152, %v1128
    %v1154 = vsel %vm1067, %v124, %v1151
    %v1155 = vsel %vm1067, 0, %v1153
    %v1156 = vcosq.f32.pop %v1154
    %v1157 = vsinq.f32.pop %v1154
    %vm1158 = vweird.f32 %v124
    %v1159 = vand.u32 %v1155, 3
    %vm1160 = vcmp.lt.s32.totalorder %v1159, 2
    %vm1161 = vcmp.eq.s32.totalorder %v1159, 0
    %v1162 = vxor.u32 %v1157, 2147483648
    %v1163 = vsel %vm1161, %v1156, %v1162
    %vm1164 = vcmp.eq.s32.totalorder %v1159, 2
    %v1165 = vxor.u32 %v1156, 2147483648
    %v1166 = vsel %vm1164, %v1165, %v1157
    %v1167 = vsel %vm1160, %v1163, %v1166
    %v1168 = vsel %vm1158, nan, %v1167
    %v1169 = vand.u32 2147483647, %v125
    %vm1170 = vcmp.le.f32.partialorder %v1169, 0.7853982
    %vm1171 = vcmp.lt.s32.totalorder %v125, 0
    %v1172 = vand.u32 %v125, 2139095040
    %v1173 = vshrl.u32 %v1172, 23
    %v1174 = vsub.s32 %v1173, 127
    %v1175 = vand.u32 2147483647, %v125
    %v1176 = vand.u32 %v1175, 8388607
    %v1177 = vor.u32 %v1176, 8388608
    %v1178 = vsub.s32 0, %v1177
    %v1179 = vadd.s32 %v1174, 1
    %vm1180 = vcmp.gt.s32.totalorder %v1179, 0
    %v1181 = vsel %vm1180, %v1179, 0
    %v1182 = vshrl.u32 %v1181, 5
    %v1183 = vand.u32 %v1181, 31
    %v1184 = vsub.s32 32, %v1183
    %v1185 = vshrl.u32 683565275, %v1184
    %v1186 = vshll.u32 683565275, %v1183
    %v1187 = vshrl.u32 2475754826, %v1184
    %v1188 = vor.u32 %v1186, %v1187
    %v1189 = vshll.u32 2475754826, %v1183
    %v1190 = vshrl.u32 2131351028, %v1184
    %v1191 = vor.u32 %v1189, %v1190
    %v1192 = vshll.u32 2131351028, %v1183
    %v1193 = vshrl.u32 2102212464, %v1184
    %v1194 = vor.u32 %v1192, %v1193
    %v1195 = vshll.u32 2102212464, %v1183
    %v1196 = vshrl.u32 920167782, %v1184
    %v1197 = vor.u32 %v1195, %v1196
    %v1198 = vshll.u32 920167782, %v1183
    %v1199 = vshrl.u32 1326507024, %v1184
    %v1200 = vor.u32 %v1198, %v1199
    %vm1201 = vcmp.lt.s32.totalorder %v1182, 1
    %vm1202 = vcmp.lt.s32.totalorder %v1182, 2
    %vm1203 = vcmp.lt.s32.totalorder %v1182, 3
    %vm1204 = vcmp.lt.s32.totalorder %v1182, 4
    %v1205 = vsel %vm1201, %v1185, %v1188
    %v1206 = vsel %vm1204, %v1194, 2102212464
    %v1207 = vsel %vm1203, %v1191, %v1206
    %v1208 = vsel %vm1202, %v1205, %v1207
    %v1209 = vsel %vm1201, %v1188, %v1191
    %v1210 = vsel %vm1204, %v1197, 920167782
    %v1211 = vsel %vm1203, %v1194, %v1210
    %v1212 = vsel %vm1202, %v1209, %v1211
    %v1213 = vsel %vm1201, %v1191, %v1194
    %v1214 = vsel %vm1204, %v1200, 1326507024
    %v1215 = vsel %vm1203, %v1197, %v1214
    %v1216 = vsel %vm1202, %v1213, %v1215
    %v1217 = vshll.u32 %v1177, 8
    %v1218 = vmul.u32.u64.compose %v1217, %v1216
    %v1219 = vextract.low.u32 %v1218
    %v1220 = vextract.high.u32 %v1218
    %v1221 = vmul.u32.u64.compose %v1217, %v1212
    %v1222 = vextract.low.u32 %v1221
    %v1223 = vextract.high.u32 %v1221
    %v1224 = vmul.u32 %v1217, %v1208
    %v1225 = vadd.s32 %v1220, %v1222
    %vm1226 = vc.u32 %v1220, %v1222
    %v1227 = vadd.s32 %v1223, 1
    %v1228 = vsel %vm1226, %v1227, %v1223
    %v1229 = vadd.s32 %v1224, %v1228
    %v1230 = vadd.s32 %v1229, 536870912
    %v1231 = vshrl.u32 %v1230, 30
    %v1232 = vshll.u32 %v1231, 30
    %v1233 = vsub.s32 %v1229, %v1232
    %vm1234 = vcmp.lt.s32.totalorder %v1233, 0
    %v1235 = vsub.s32 0, %v1233
    %v1236 = vsel %vm1234, %v1235, %v1233
    %v1237 = vclz %v1236
    %v1238 = vsub.s32 %v1237, 2
    %vm1239 = vcmp.gt.s32.totalorder 0, %v1238
    %v1240 = vsel %vm1239, 0, %v1238
    %v1241 = vsub.s32 32, %v1240
    %v1242 = vshll.u32 %v1233, %v1240
    %v1243 = vshrl.u32 %v1225, %v1241
    %v1244 = vor.u32 %v1242, %v1243
    %v1245 = vsub.s32 4294967266, %v1240
    %v1246 = vadd.s32 %v1245, 127
    %v1247 = vshll.u32 %v1246, 23
    %v1248 = vor.u32 4788187, %v1247
    %v1249 = vand.u32 2147483647, %v1248
    %v1251 = vcvt.s32.f32 %v1244
    %v1252 = vmul.f32 %v1251, %v1249
    %v1253 = vxor.u32 %v1252, 2147483648
    %v1254 = vsel %vm1171, %v1253, %v1252
    %v1255 = vsub.s32 4, %v1231
    %v1256 = vsel %vm1171, %v1255, %v1231
    %v1257 = vsel %vm1170, %v125, %v1254
    %v1258 = vsel %vm1170, 0, %v1256
    %v1259 = vcosq.f32.pop %v1257
    %v1260 = vsinq.f32.pop %v1257
    %vm1261 = vweird.f32 %v125
    %v1262 = vand.u32 %v1258, 3
    %vm1263 = vcmp.lt.s32.totalorder %v1262, 2
    %vm1264 = vcmp.eq.s32.totalorder %v1262, 0
    %v1265 = vxor.u32 %v1260, 2147483648
    %v1266 = vsel %vm1264, %v1259, %v1265
    %vm1267 = vcmp.eq.s32.totalorder %v1262, 2
    %v1268 = vxor.u32 %v1259, 2147483648
    %v1269 = vsel %vm1267, %v1268, %v1260
    %v1270 = vsel %vm1263, %v1266, %v1269
    %v1271 = vsel %vm1261, nan, %v1270
    %v1272 = vand.u32 2147483647, %v126
    %vm1273 = vcmp.le.f32.partialorder %v1272, 0.7853982
    %vm1274 = vcmp.lt.s32.totalorder %v126, 0
    %v1275 = vand.u32 %v126, 2139095040
    %v1276 = vshrl.u32 %v1275, 23
    %v1277 = vsub.s32 %v1276, 127
    %v1278 = vand.u32 2147483647, %v126
    %v1279 = vand.u32 %v1278, 8388607
    %v1280 = vor.u32 %v1279, 8388608
    %v1281 = vsub.s32 0, %v1280
    %v1282 = vadd.s32 %v1277, 1
    %vm1283 = vcmp.gt.s32.totalorder %v1282, 0
    %v1284 = vsel %vm1283, %v1282, 0
    %v1285 = vshrl.u32 %v1284, 5
    %v1286 = vand.u32 %v1284, 31
    %v1287 = vsub.s32 32, %v1286
    %v1288 = vshrl.u32 683565275, %v1287
    %v1289 = vshll.u32 683565275, %v1286
    %v1290 = vshrl.u32 2475754826, %v1287
    %v1291 = vor.u32 %v1289, %v1290
    %v1292 = vshll.u32 2475754826, %v1286
    %v1293 = vshrl.u32 2131351028, %v1287
    %v1294 = vor.u32 %v1292, %v1293
    %v1295 = vshll.u32 2131351028, %v1286
    %v1296 = vshrl.u32 2102212464, %v1287
    %v1297 = vor.u32 %v1295, %v1296
    %v1298 = vshll.u32 2102212464, %v1286
    %v1299 = vshrl.u32 920167782, %v1287
    %v1300 = vor.u32 %v1298, %v1299
    %v1301 = vshll.u32 920167782, %v1286
    %v1302 = vshrl.u32 1326507024, %v1287
    %v1303 = vor.u32 %v1301, %v1302
    %vm1304 = vcmp.lt.s32.totalorder %v1285, 1
    %vm1305 = vcmp.lt.s32.totalorder %v1285, 2
    %vm1306 = vcmp.lt.s32.totalorder %v1285, 3
    %vm1307 = vcmp.lt.s32.totalorder %v1285, 4
    %v1308 = vsel %vm1304, %v1288, %v1291
    %v1309 = vsel %vm1307, %v1297, 2102212464
    %v1310 = vsel %vm1306, %v1294, %v1309
    %v1311 = vsel %vm1305, %v1308, %v1310
    %v1312 = vsel %vm1304, %v1291, %v1294
    %v1313 = vsel %vm1307, %v1300, 920167782
    %v1314 = vsel %vm1306, %v1297, %v1313
    %v1315 = vsel %vm1305, %v1312, %v1314
    %v1316 = vsel %vm1304, %v1294, %v1297
    %v1317 = vsel %vm1307, %v1303, 1326507024
    %v1318 = vsel %vm1306, %v1300, %v1317
    %v1319 = vsel %vm1305, %v1316, %v1318
    %v1320 = vshll.u32 %v1280, 8
    %v1321 = vmul.u32.u64.compose %v1320, %v1319
    %v1322 = vextract.low.u32 %v1321
    %v1323 = vextract.high.u32 %v1321
    %v1324 = vmul.u32.u64.compose %v1320, %v1315
    %v1325 = vextract.low.u32 %v1324
    %v1326 = vextract.high.u32 %v1324
    %v1327 = vmul.u32 %v1320, %v1311
    %v1328 = vadd.s32 %v1323, %v1325
    %vm1329 = vc.u32 %v1323, %v1325
    %v1330 = vadd.s32 %v1326, 1
    %v1331 = vsel %vm1329, %v1330, %v1326
    %v1332 = vadd.s32 %v1327, %v1331
    %v1333 = vadd.s32 %v1332, 536870912
    %v1334 = vshrl.u32 %v1333, 30
    %v1335 = vshll.u32 %v1334, 30
    %v1336 = vsub.s32 %v1332, %v1335
    %vm1337 = vcmp.lt.s32.totalorder %v1336, 0
    %v1338 = vsub.s32 0, %v1336
    %v1339 = vsel %vm1337, %v1338, %v1336
    %v1340 = vclz %v1339
    %v1341 = vsub.s32 %v1340, 2
    %vm1342 = vcmp.gt.s32.totalorder 0, %v1341
    %v1343 = vsel %vm1342, 0, %v1341
    %v1344 = vsub.s32 32, %v1343
    %v1345 = vshll.u32 %v1336, %v1343
    %v1346 = vshrl.u32 %v1328, %v1344
    %v1347 = vor.u32 %v1345, %v1346
    %v1348 = vsub.s32 4294967266, %v1343
    %v1349 = vadd.s32 %v1348, 127
    %v1350 = vshll.u32 %v1349, 23
    %v1351 = vor.u32 4788187, %v1350
    %v1352 = vand.u32 2147483647, %v1351
    %v1354 = vcvt.s32.f32 %v1347
    %v1355 = vmul.f32 %v1354, %v1352
    %v1356 = vxor.u32 %v1355, 2147483648
    %v1357 = vsel %vm1274, %v1356, %v1355
    %v1358 = vsub.s32 4, %v1334
    %v1359 = vsel %vm1274, %v1358, %v1334
    %v1360 = vsel %vm1273, %v126, %v1357
    %v1361 = vsel %vm1273, 0, %v1359
    %v1362 = vcosq.f32.pop %v1360
    %v1363 = vsinq.f32.pop %v1360
    %vm1364 = vweird.f32 %v126
    %v1365 = vand.u32 %v1361, 3
    %vm1366 = vcmp.lt.s32.totalorder %v1365, 2
    %vm1367 = vcmp.eq.s32.totalorder %v1365, 0
    %v1368 = vxor.u32 %v1363, 2147483648
    %v1369 = vsel %vm1367, %v1362, %v1368
    %vm1370 = vcmp.eq.s32.totalorder %v1365, 2
    %v1371 = vxor.u32 %v1362, 2147483648
    %v1372 = vsel %vm1370, %v1371, %v1363
    %v1373 = vsel %vm1366, %v1369, %v1372
    %v1374 = vsel %vm1364, nan, %v1373
    %v1375 = vand.u32 2147483647, %v127
    %vm1376 = vcmp.le.f32.partialorder %v1375, 0.7853982
    %vm1377 = vcmp.lt.s32.totalorder %v127, 0
    %v1378 = vand.u32 %v127, 2139095040
    %v1379 = vshrl.u32 %v1378, 23
    %v1380 = vsub.s32 %v1379, 127
    %v1381 = vand.u32 2147483647, %v127
    %v1382 = vand.u32 %v1381, 8388607
    %v1383 = vor.u32 %v1382, 8388608
    %v1384 = vsub.s32 0, %v1383
    %v1385 = vadd.s32 %v1380, 1
    %vm1386 = vcmp.gt.s32.totalorder %v1385, 0
    %v1387 = vsel %vm1386, %v1385, 0
    %v1388 = vshrl.u32 %v1387, 5
    %v1389 = vand.u32 %v1387, 31
    %v1390 = vsub.s32 32, %v1389
    %v1391 = vshrl.u32 683565275, %v1390
    %v1392 = vshll.u32 683565275, %v1389
    %v1393 = vshrl.u32 2475754826, %v1390
    %v1394 = vor.u32 %v1392, %v1393
    %v1395 = vshll.u32 2475754826, %v1389
    %v1396 = vshrl.u32 2131351028, %v1390
    %v1397 = vor.u32 %v1395, %v1396
    %v1398 = vshll.u32 2131351028, %v1389
    %v1399 = vshrl.u32 2102212464, %v1390
    %v1400 = vor.u32 %v1398, %v1399
    %v1401 = vshll.u32 2102212464, %v1389
    %v1402 = vshrl.u32 920167782, %v1390
    %v1403 = vor.u32 %v1401, %v1402
    %v1404 = vshll.u32 920167782, %v1389
    %v1405 = vshrl.u32 1326507024, %v1390
    %v1406 = vor.u32 %v1404, %v1405
    %vm1407 = vcmp.lt.s32.totalorder %v1388, 1
    %vm1408 = vcmp.lt.s32.totalorder %v1388, 2
    %vm1409 = vcmp.lt.s32.totalorder %v1388, 3
    %vm1410 = vcmp.lt.s32.totalorder %v1388, 4
    %v1411 = vsel %vm1407, %v1391, %v1394
    %v1412 = vsel %vm1410, %v1400, 2102212464
    %v1413 = vsel %vm1409, %v1397, %v1412
    %v1414 = vsel %vm1408, %v1411, %v1413
    %v1415 = vsel %vm1407, %v1394, %v1397
    %v1416 = vsel %vm1410, %v1403, 920167782
    %v1417 = vsel %vm1409, %v1400, %v1416
    %v1418 = vsel %vm1408, %v1415, %v1417
    %v1419 = vsel %vm1407, %v1397, %v1400
    %v1420 = vsel %vm1410, %v1406, 1326507024
    %v1421 = vsel %vm1409, %v1403, %v1420
    %v1422 = vsel %vm1408, %v1419, %v1421
    %v1423 = vshll.u32 %v1383, 8
    %v1424 = vmul.u32.u64.compose %v1423, %v1422
    %v1425 = vextract.low.u32 %v1424
    %v1426 = vextract.high.u32 %v1424
    %v1427 = vmul.u32.u64.compose %v1423, %v1418
    %v1428 = vextract.low.u32 %v1427
    %v1429 = vextract.high.u32 %v1427
    %v1430 = vmul.u32 %v1423, %v1414
    %v1431 = vadd.s32 %v1426, %v1428
    %vm1432 = vc.u32 %v1426, %v1428
    %v1433 = vadd.s32 %v1429, 1
    %v1434 = vsel %vm1432, %v1433, %v1429
    %v1435 = vadd.s32 %v1430, %v1434
    %v1436 = vadd.s32 %v1435, 536870912
    %v1437 = vshrl.u32 %v1436, 30
    %v1438 = vshll.u32 %v1437, 30
    %v1439 = vsub.s32 %v1435, %v1438
    %vm1440 = vcmp.lt.s32.totalorder %v1439, 0
    %v1441 = vsub.s32 0, %v1439
    %v1442 = vsel %vm1440, %v1441, %v1439
    %v1443 = vclz %v1442
    %v1444 = vsub.s32 %v1443, 2
    %vm1445 = vcmp.gt.s32.totalorder 0, %v1444
    %v1446 = vsel %vm1445, 0, %v1444
    %v1447 = vsub.s32 32, %v1446
    %v1448 = vshll.u32 %v1439, %v1446
    %v1449 = vshrl.u32 %v1431, %v1447
    %v1450 = vor.u32 %v1448, %v1449
    %v1451 = vsub.s32 4294967266, %v1446
    %v1452 = vadd.s32 %v1451, 127
    %v1453 = vshll.u32 %v1452, 23
    %v1454 = vor.u32 4788187, %v1453
    %v1455 = vand.u32 2147483647, %v1454
    %v1457 = vcvt.s32.f32 %v1450
    %v1458 = vmul.f32 %v1457, %v1455
    %v1459 = vxor.u32 %v1458, 2147483648
    %v1460 = vsel %vm1377, %v1459, %v1458
    %v1461 = vsub.s32 4, %v1437
    %v1462 = vsel %vm1377, %v1461, %v1437
    %v1463 = vsel %vm1376, %v127, %v1460
    %v1464 = vsel %vm1376, 0, %v1462
    %v1465 = vcosq.f32.pop %v1463
    %v1466 = vsinq.f32.pop %v1463
    %vm1467 = vweird.f32 %v127
    %v1468 = vand.u32 %v1464, 3
    %vm1469 = vcmp.lt.s32.totalorder %v1468, 2
    %vm1470 = vcmp.eq.s32.totalorder %v1468, 0
    %v1471 = vxor.u32 %v1466, 2147483648
    %v1472 = vsel %vm1470, %v1465, %v1471
    %vm1473 = vcmp.eq.s32.totalorder %v1468, 2
    %v1474 = vxor.u32 %v1465, 2147483648
    %v1475 = vsel %vm1473, %v1474, %v1466
    %v1476 = vsel %vm1469, %v1472, %v1475
    %v1477 = vsel %vm1467, nan, %v1476
    %v1478 = vand.u32 2147483647, %v128
    %vm1479 = vcmp.le.f32.partialorder %v1478, 0.7853982
    %vm1480 = vcmp.lt.s32.totalorder %v128, 0
    %v1481 = vand.u32 %v128, 2139095040
    %v1482 = vshrl.u32 %v1481, 23
    %v1483 = vsub.s32 %v1482, 127
    %v1484 = vand.u32 2147483647, %v128
    %v1485 = vand.u32 %v1484, 8388607
    %v1486 = vor.u32 %v1485, 8388608
    %v1487 = vsub.s32 0, %v1486
    %v1488 = vadd.s32 %v1483, 1
    %vm1489 = vcmp.gt.s32.totalorder %v1488, 0
    %v1490 = vsel %vm1489, %v1488, 0
    %v1491 = vshrl.u32 %v1490, 5
    %v1492 = vand.u32 %v1490, 31
    %v1493 = vsub.s32 32, %v1492
    %v1494 = vshrl.u32 683565275, %v1493
    %v1495 = vshll.u32 683565275, %v1492
    %v1496 = vshrl.u32 2475754826, %v1493
    %v1497 = vor.u32 %v1495, %v1496
    %v1498 = vshll.u32 2475754826, %v1492
    %v1499 = vshrl.u32 2131351028, %v1493
    %v1500 = vor.u32 %v1498, %v1499
    %v1501 = vshll.u32 2131351028, %v1492
    %v1502 = vshrl.u32 2102212464, %v1493
    %v1503 = vor.u32 %v1501, %v1502
    %v1504 = vshll.u32 2102212464, %v1492
    %v1505 = vshrl.u32 920167782, %v1493
    %v1506 = vor.u32 %v1504, %v1505
    %v1507 = vshll.u32 920167782, %v1492
    %v1508 = vshrl.u32 1326507024, %v1493
    %v1509 = vor.u32 %v1507, %v1508
    %vm1510 = vcmp.lt.s32.totalorder %v1491, 1
    %vm1511 = vcmp.lt.s32.totalorder %v1491, 2
    %vm1512 = vcmp.lt.s32.totalorder %v1491, 3
    %vm1513 = vcmp.lt.s32.totalorder %v1491, 4
    %v1514 = vsel %vm1510, %v1494, %v1497
    %v1515 = vsel %vm1513, %v1503, 2102212464
    %v1516 = vsel %vm1512, %v1500, %v1515
    %v1517 = vsel %vm1511, %v1514, %v1516
    %v1518 = vsel %vm1510, %v1497, %v1500
    %v1519 = vsel %vm1513, %v1506, 920167782
    %v1520 = vsel %vm1512, %v1503, %v1519
    %v1521 = vsel %vm1511, %v1518, %v1520
    %v1522 = vsel %vm1510, %v1500, %v1503
    %v1523 = vsel %vm1513, %v1509, 1326507024
    %v1524 = vsel %vm1512, %v1506, %v1523
    %v1525 = vsel %vm1511, %v1522, %v1524
    %v1526 = vshll.u32 %v1486, 8
    %v1527 = vmul.u32.u64.compose %v1526, %v1525
    %v1528 = vextract.low.u32 %v1527
    %v1529 = vextract.high.u32 %v1527
    %v1530 = vmul.u32.u64.compose %v1526, %v1521
    %v1531 = vextract.low.u32 %v1530
    %v1532 = vextract.high.u32 %v1530
    %v1533 = vmul.u32 %v1526, %v1517
    %v1534 = vadd.s32 %v1529, %v1531
    %vm1535 = vc.u32 %v1529, %v1531
    %v1536 = vadd.s32 %v1532, 1
    %v1537 = vsel %vm1535, %v1536, %v1532
    %v1538 = vadd.s32 %v1533, %v1537
    %v1539 = vadd.s32 %v1538, 536870912
    %v1540 = vshrl.u32 %v1539, 30
    %v1541 = vshll.u32 %v1540, 30
    %v1542 = vsub.s32 %v1538, %v1541
    %vm1543 = vcmp.lt.s32.totalorder %v1542, 0
    %v1544 = vsub.s32 0, %v1542
    %v1545 = vsel %vm1543, %v1544, %v1542
    %v1546 = vclz %v1545
    %v1547 = vsub.s32 %v1546, 2
    %vm1548 = vcmp.gt.s32.totalorder 0, %v1547
    %v1549 = vsel %vm1548, 0, %v1547
    %v1550 = vsub.s32 32, %v1549
    %v1551 = vshll.u32 %v1542, %v1549
    %v1552 = vshrl.u32 %v1534, %v1550
    %v1553 = vor.u32 %v1551, %v1552
    %v1554 = vsub.s32 4294967266, %v1549
    %v1555 = vadd.s32 %v1554, 127
    %v1556 = vshll.u32 %v1555, 23
    %v1557 = vor.u32 4788187, %v1556
    %v1558 = vand.u32 2147483647, %v1557
    %v1560 = vcvt.s32.f32 %v1553
    %v1561 = vmul.f32 %v1560, %v1558
    %v1562 = vxor.u32 %v1561, 2147483648
    %v1563 = vsel %vm1480, %v1562, %v1561
    %v1564 = vsub.s32 4, %v1540
    %v1565 = vsel %vm1480, %v1564, %v1540
    %v1566 = vsel %vm1479, %v128, %v1563
    %v1567 = vsel %vm1479, 0, %v1565
    %v1568 = vcosq.f32.pop %v1566
    %v1569 = vsinq.f32.pop %v1566
    %vm1570 = vweird.f32 %v128
    %v1571 = vand.u32 %v1567, 3
    %vm1572 = vcmp.lt.s32.totalorder %v1571, 2
    %vm1573 = vcmp.eq.s32.totalorder %v1571, 0
    %v1574 = vxor.u32 %v1569, 2147483648
    %v1575 = vsel %vm1573, %v1568, %v1574
    %vm1576 = vcmp.eq.s32.totalorder %v1571, 2
    %v1577 = vxor.u32 %v1568, 2147483648
    %v1578 = vsel %vm1576, %v1577, %v1569
    %v1579 = vsel %vm1572, %v1575, %v1578
    %v1580 = vsel %vm1570, nan, %v1579
    %v1581 = vand.u32 2147483647, %v129
    %vm1582 = vcmp.le.f32.partialorder %v1581, 0.7853982
    %vm1583 = vcmp.lt.s32.totalorder %v129, 0
    %v1584 = vand.u32 %v129, 2139095040
    %v1585 = vshrl.u32 %v1584, 23
    %v1586 = vsub.s32 %v1585, 127
    %v1587 = vand.u32 2147483647, %v129
    %v1588 = vand.u32 %v1587, 8388607
    %v1589 = vor.u32 %v1588, 8388608
    %v1590 = vsub.s32 0, %v1589
    %v1591 = vadd.s32 %v1586, 1
    %vm1592 = vcmp.gt.s32.totalorder %v1591, 0
    %v1593 = vsel %vm1592, %v1591, 0
    %v1594 = vshrl.u32 %v1593, 5
    %v1595 = vand.u32 %v1593, 31
    %v1596 = vsub.s32 32, %v1595
    %v1597 = vshrl.u32 683565275, %v1596
    %v1598 = vshll.u32 683565275, %v1595
    %v1599 = vshrl.u32 2475754826, %v1596
    %v1600 = vor.u32 %v1598, %v1599
    %v1601 = vshll.u32 2475754826, %v1595
    %v1602 = vshrl.u32 2131351028, %v1596
    %v1603 = vor.u32 %v1601, %v1602
    %v1604 = vshll.u32 2131351028, %v1595
    %v1605 = vshrl.u32 2102212464, %v1596
    %v1606 = vor.u32 %v1604, %v1605
    %v1607 = vshll.u32 2102212464, %v1595
    %v1608 = vshrl.u32 920167782, %v1596
    %v1609 = vor.u32 %v1607, %v1608
    %v1610 = vshll.u32 920167782, %v1595
    %v1611 = vshrl.u32 1326507024, %v1596
    %v1612 = vor.u32 %v1610, %v1611
    %vm1613 = vcmp.lt.s32.totalorder %v1594, 1
    %vm1614 = vcmp.lt.s32.totalorder %v1594, 2
    %vm1615 = vcmp.lt.s32.totalorder %v1594, 3
    %vm1616 = vcmp.lt.s32.totalorder %v1594, 4
    %v1617 = vsel %vm1613, %v1597, %v1600
    %v1618 = vsel %vm1616, %v1606, 2102212464
    %v1619 = vsel %vm1615, %v1603, %v1618
    %v1620 = vsel %vm1614, %v1617, %v1619
    %v1621 = vsel %vm1613, %v1600, %v1603
    %v1622 = vsel %vm1616, %v1609, 920167782
    %v1623 = vsel %vm1615, %v1606, %v1622
    %v1624 = vsel %vm1614, %v1621, %v1623
    %v1625 = vsel %vm1613, %v1603, %v1606
    %v1626 = vsel %vm1616, %v1612, 1326507024
    %v1627 = vsel %vm1615, %v1609, %v1626
    %v1628 = vsel %vm1614, %v1625, %v1627
    %v1629 = vshll.u32 %v1589, 8
    %v1630 = vmul.u32.u64.compose %v1629, %v1628
    %v1631 = vextract.low.u32 %v1630
    %v1632 = vextract.high.u32 %v1630
    %v1633 = vmul.u32.u64.compose %v1629, %v1624
    %v1634 = vextract.low.u32 %v1633
    %v1635 = vextract.high.u32 %v1633
    %v1636 = vmul.u32 %v1629, %v1620
    %v1637 = vadd.s32 %v1632, %v1634
    %vm1638 = vc.u32 %v1632, %v1634
    %v1639 = vadd.s32 %v1635, 1
    %v1640 = vsel %vm1638, %v1639, %v1635
    %v1641 = vadd.s32 %v1636, %v1640
    %v1642 = vadd.s32 %v1641, 536870912
    %v1643 = vshrl.u32 %v1642, 30
    %v1644 = vshll.u32 %v1643, 30
    %v1645 = vsub.s32 %v1641, %v1644
    %vm1646 = vcmp.lt.s32.totalorder %v1645, 0
    %v1647 = vsub.s32 0, %v1645
    %v1648 = vsel %vm1646, %v1647, %v1645
    %v1649 = vclz %v1648
    %v1650 = vsub.s32 %v1649, 2
    %vm1651 = vcmp.gt.s32.totalorder 0, %v1650
    %v1652 = vsel %vm1651, 0, %v1650
    %v1653 = vsub.s32 32, %v1652
    %v1654 = vshll.u32 %v1645, %v1652
    %v1655 = vshrl.u32 %v1637, %v1653
    %v1656 = vor.u32 %v1654, %v1655
    %v1657 = vsub.s32 4294967266, %v1652
    %v1658 = vadd.s32 %v1657, 127
    %v1659 = vshll.u32 %v1658, 23
    %v1660 = vor.u32 4788187, %v1659
    %v1661 = vand.u32 2147483647, %v1660
    %v1663 = vcvt.s32.f32 %v1656
    %v1664 = vmul.f32 %v1663, %v1661
    %v1665 = vxor.u32 %v1664, 2147483648
    %v1666 = vsel %vm1583, %v1665, %v1664
    %v1667 = vsub.s32 4, %v1643
    %v1668 = vsel %vm1583, %v1667, %v1643
    %v1669 = vsel %vm1582, %v129, %v1666
    %v1670 = vsel %vm1582, 0, %v1668
    %v1671 = vcosq.f32.pop %v1669
    %v1672 = vsinq.f32.pop %v1669
    %vm1673 = vweird.f32 %v129
    %v1674 = vand.u32 %v1670, 3
    %vm1675 = vcmp.lt.s32.totalorder %v1674, 2
    %vm1676 = vcmp.eq.s32.totalorder %v1674, 0
    %v1677 = vxor.u32 %v1672, 2147483648
    %v1678 = vsel %vm1676, %v1671, %v1677
    %vm1679 = vcmp.eq.s32.totalorder %v1674, 2
    %v1680 = vxor.u32 %v1671, 2147483648
    %v1681 = vsel %vm1679, %v1680, %v1672
    %v1682 = vsel %vm1675, %v1678, %v1681
    %v1683 = vsel %vm1673, nan, %v1682
    %v1684 = vand.u32 2147483647, %v130
    %vm1685 = vcmp.le.f32.partialorder %v1684, 0.7853982
    %vm1686 = vcmp.lt.s32.totalorder %v130, 0
    %v1687 = vand.u32 %v130, 2139095040
    %v1688 = vshrl.u32 %v1687, 23
    %v1689 = vsub.s32 %v1688, 127
    %v1690 = vand.u32 2147483647, %v130
    %v1691 = vand.u32 %v1690, 8388607
    %v1692 = vor.u32 %v1691, 8388608
    %v1693 = vsub.s32 0, %v1692
    %v1694 = vadd.s32 %v1689, 1
    %vm1695 = vcmp.gt.s32.totalorder %v1694, 0
    %v1696 = vsel %vm1695, %v1694, 0
    %v1697 = vshrl.u32 %v1696, 5
    %v1698 = vand.u32 %v1696, 31
    %v1699 = vsub.s32 32, %v1698
    %v1700 = vshrl.u32 683565275, %v1699
    %v1701 = vshll.u32 683565275, %v1698
    %v1702 = vshrl.u32 2475754826, %v1699
    %v1703 = vor.u32 %v1701, %v1702
    %v1704 = vshll.u32 2475754826, %v1698
    %v1705 = vshrl.u32 2131351028, %v1699
    %v1706 = vor.u32 %v1704, %v1705
    %v1707 = vshll.u32 2131351028, %v1698
    %v1708 = vshrl.u32 2102212464, %v1699
    %v1709 = vor.u32 %v1707, %v1708
    %v1710 = vshll.u32 2102212464, %v1698
    %v1711 = vshrl.u32 920167782, %v1699
    %v1712 = vor.u32 %v1710, %v1711
    %v1713 = vshll.u32 920167782, %v1698
    %v1714 = vshrl.u32 1326507024, %v1699
    %v1715 = vor.u32 %v1713, %v1714
    %vm1716 = vcmp.lt.s32.totalorder %v1697, 1
    %vm1717 = vcmp.lt.s32.totalorder %v1697, 2
    %vm1718 = vcmp.lt.s32.totalorder %v1697, 3
    %vm1719 = vcmp.lt.s32.totalorder %v1697, 4
    %v1720 = vsel %vm1716, %v1700, %v1703
    %v1721 = vsel %vm1719, %v1709, 2102212464
    %v1722 = vsel %vm1718, %v1706, %v1721
    %v1723 = vsel %vm1717, %v1720, %v1722
    %v1724 = vsel %vm1716, %v1703, %v1706
    %v1725 = vsel %vm1719, %v1712, 920167782
    %v1726 = vsel %vm1718, %v1709, %v1725
    %v1727 = vsel %vm1717, %v1724, %v1726
    %v1728 = vsel %vm1716, %v1706, %v1709
    %v1729 = vsel %vm1719, %v1715, 1326507024
    %v1730 = vsel %vm1718, %v1712, %v1729
    %v1731 = vsel %vm1717, %v1728, %v1730
    %v1732 = vshll.u32 %v1692, 8
    %v1733 = vmul.u32.u64.compose %v1732, %v1731
    %v1734 = vextract.low.u32 %v1733
    %v1735 = vextract.high.u32 %v1733
    %v1736 = vmul.u32.u64.compose %v1732, %v1727
    %v1737 = vextract.low.u32 %v1736
    %v1738 = vextract.high.u32 %v1736
    %v1739 = vmul.u32 %v1732, %v1723
    %v1740 = vadd.s32 %v1735, %v1737
    %vm1741 = vc.u32 %v1735, %v1737
    %v1742 = vadd.s32 %v1738, 1
    %v1743 = vsel %vm1741, %v1742, %v1738
    %v1744 = vadd.s32 %v1739, %v1743
    %v1745 = vadd.s32 %v1744, 536870912
    %v1746 = vshrl.u32 %v1745, 30
    %v1747 = vshll.u32 %v1746, 30
    %v1748 = vsub.s32 %v1744, %v1747
    %vm1749 = vcmp.lt.s32.totalorder %v1748, 0
    %v1750 = vsub.s32 0, %v1748
    %v1751 = vsel %vm1749, %v1750, %v1748
    %v1752 = vclz %v1751
    %v1753 = vsub.s32 %v1752, 2
    %vm1754 = vcmp.gt.s32.totalorder 0, %v1753
    %v1755 = vsel %vm1754, 0, %v1753
    %v1756 = vsub.s32 32, %v1755
    %v1757 = vshll.u32 %v1748, %v1755
    %v1758 = vshrl.u32 %v1740, %v1756
    %v1759 = vor.u32 %v1757, %v1758
    %v1760 = vsub.s32 4294967266, %v1755
    %v1761 = vadd.s32 %v1760, 127
    %v1762 = vshll.u32 %v1761, 23
    %v1763 = vor.u32 4788187, %v1762
    %v1764 = vand.u32 2147483647, %v1763
    %v1766 = vcvt.s32.f32 %v1759
    %v1767 = vmul.f32 %v1766, %v1764
    %v1768 = vxor.u32 %v1767, 2147483648
    %v1769 = vsel %vm1686, %v1768, %v1767
    %v1770 = vsub.s32 4, %v1746
    %v1771 = vsel %vm1686, %v1770, %v1746
    %v1772 = vsel %vm1685, %v130, %v1769
    %v1773 = vsel %vm1685, 0, %v1771
    %v1774 = vcosq.f32.pop %v1772
    %v1775 = vsinq.f32.pop %v1772
    %vm1776 = vweird.f32 %v130
    %v1777 = vand.u32 %v1773, 3
    %vm1778 = vcmp.lt.s32.totalorder %v1777, 2
    %vm1779 = vcmp.eq.s32.totalorder %v1777, 0
    %v1780 = vxor.u32 %v1775, 2147483648
    %v1781 = vsel %vm1779, %v1774, %v1780
    %vm1782 = vcmp.eq.s32.totalorder %v1777, 2
    %v1783 = vxor.u32 %v1774, 2147483648
    %v1784 = vsel %vm1782, %v1783, %v1775
    %v1785 = vsel %vm1778, %v1781, %v1784
    %v1786 = vsel %vm1776, nan, %v1785
    %1795 = vrot.lane.b32.xlu0 %v1065, 64
    %v1796 = vpop.permute.xlu0 %1795
    %1797 = vrot.lane.b32.xlu0 %v1168, 64
    %v1798 = vpop.permute.xlu0 %1797
    %1799 = vrot.lane.b32.xlu0 %v1271, 64
    %v1800 = vpop.permute.xlu0 %1799
    %1801 = vrot.lane.b32.xlu0 %v1374, 64
    %v1802 = vpop.permute.xlu0 %1801
    %1803 = vrot.lane.b32.xlu0 %v1477, 64
    %v1804 = vpop.permute.xlu0 %1803
    %1805 = vrot.lane.b32.xlu0 %v1580, 64
    %v1806 = vpop.permute.xlu0 %1805
    %1807 = vrot.lane.b32.xlu0 %v1683, 64
    %v1808 = vpop.permute.xlu0 %1807
    %1809 = vrot.lane.b32.xlu0 %v1786, 64
    %v1810 = vpop.permute.xlu0 %1809
    %vm1819 = vcmask 523264
    %v1820 = vsel %vm1819, %v234, %v1796
    %v1821 = vsel %vm1819, %v338, %v1798
    %v1822 = vsel %vm1819, %v442, %v1800
    %v1823 = vsel %vm1819, %v546, %v1802
    %v1824 = vsel %vm1819, %v650, %v1804
    %v1825 = vsel %vm1819, %v754, %v1806
    %v1826 = vsel %vm1819, %v858, %v1808
    %v1827 = vsel %vm1819, %v962, %v1810
    %1828 = vst [vmem:[#allocation2] sm:$0xff] %v1820
    %1829 = vst [vmem:[#allocation2 + $0x8] sm:$0xff] %v1821
    %1830 = vst [vmem:[#allocation2 + $0x10] sm:$0xff] %v1822
    %1831 = vst [vmem:[#allocation2 + $0x18] sm:$0xff] %v1823
    %1832 = vst [vmem:[#allocation2 + $0x20] sm:$0xff] %v1824
    %1833 = vst [vmem:[#allocation2 + $0x28] sm:$0xff] %v1825
    %1834 = vst [vmem:[#allocation2 + $0x30] sm:$0xff] %v1826
    %1835 = vst [vmem:[#allocation2 + $0x38] sm:$0xff] %v1827
    // Predicated region
    $region10: #{tpu_custom_call.1} parent=1 // pred_check
      _
    $region11: #{tpu_custom_call.1} parent=1 // pred_check_branch
      %1837 = sbr.rel (0) target = $region13
    $region12: #{tpu_custom_call.1} parent=1 // pred_region
      %s1839 = ssub.s32 1024, 1024
      %1840 = vsyncadd [#allocation3], %s1839
      %s1841 = sshll.u32 [#allocation2], 4
      %s1842 = int_to_ptr.vmem [resolvable:$true] %s1841
      %1847 = dma.vmem_to_hbm [thread:$0]  %s1842, 1024, %s2, [#allocation3], 128, 128, 8
    $region13: #{tpu_custom_call.1} parent=1 // pred_fallthru
      _
    // Predicated region
    $region14: #{tpu_custom_call.1} parent=1 // pred_check
      _
    $region15: #{tpu_custom_call.1} parent=1 // pred_check_branch
      %1849 = sbr.rel (0) target = $region17
    $region16: #{tpu_custom_call.1} parent=1 // pred_region
      %1850 = dma.done [#allocation3], 1024
    $region17: #{tpu_custom_call.1} parent=1 // pred_fallthru
      _
    %1851 = vsyncpa [#allocation3], 1

</llo_original>
